<compile_context>
chip_gen: v7x
topology: tpu7x:2x2x1
jax: 0.10.0
libtpu: 0.0.40
codegen_flags: <defaults>
</compile_context>

<pallas_src>
import functools

import jax
import jax.numpy as jnp
from jax import lax
from jax.experimental import pallas as pl
from jax.experimental.pallas import tpu as pltpu

LANE = 128          # lane width: channel dims are padded to multiples of this
STATS_ROWS = 8      # sublane-aligned rows used to emit per-tile BN stat partials


def _round_up(x, m):
    return (x + m - 1) // m * m


# ----------------------------------------------------------------------------
# In-kernel helpers
# ----------------------------------------------------------------------------
def _mask_invalid_rows(y, m_valid):
    """Zero rows whose global row index is >= m_valid (partial last row tile)."""
    if m_valid is None:
        return y
    tm = y.shape[0]
    row = pl.program_id(0) * tm + lax.broadcasted_iota(jnp.int32, (tm, 1), 0)
    return jnp.where(row < m_valid, y, 0.0)


def _emit_y_and_stats(y, y_ref, ps_ref, pq_ref):
    """Store y (cast to output dtype) + f32 per-tile BN partial sums."""
    y_ref[...] = y.astype(y_ref.dtype)
    s = jnp.sum(y, axis=0, keepdims=True)
    q = jnp.sum(y * y, axis=0, keepdims=True)
    ps_ref[...] = jnp.broadcast_to(s, ps_ref.shape)
    pq_ref[...] = jnp.broadcast_to(q, pq_ref.shape)


# ----------------------------------------------------------------------------
# Stage 1 / stage 3: 1x1 conv as a channel matmul (optionally with the previous
# stage's BN+ReLU fused on the input), emitting unnormalized y + BN partials.
# ----------------------------------------------------------------------------
def _mm_stats_kernel(x_ref, w_ref, y_ref, ps_ref, pq_ref, *, m_valid, precision):
    y = jnp.dot(x_ref[...], w_ref[...],
                preferred_element_type=jnp.float32, precision=precision)
    y = _mask_invalid_rows(y, m_valid)
    _emit_y_and_stats(y, y_ref, ps_ref, pq_ref)


def _norm_mm_stats_kernel(x_ref, sc_ref, sh_ref, w_ref, y_ref, ps_ref, pq_ref,
                          *, m_valid, precision):
    # Fused BN + ReLU of the previous stage's unnormalized activation (f32 math).
    a = jnp.maximum(x_ref[...].astype(jnp.float32) * sc_ref[...] + sh_ref[...], 0.0)
    y = jnp.dot(a.astype(w_ref.dtype), w_ref[...],
                preferred_element_type=jnp.float32, precision=precision)
    y = _mask_invalid_rows(y, m_valid)
    _emit_y_and_stats(y, y_ref, ps_ref, pq_ref)


def matmul_stats(x, w, tm, precision, out_dtype, scale=None, shift=None):
    m, k = x.shape
    cout = w.shape[1]
    n_tiles = pl.cdiv(m, tm)
    m_valid = None if m % tm == 0 else m
    if scale is None:
        kernel = functools.partial(_mm_stats_kernel, m_valid=m_valid,
                                   precision=precision)
        args = (x, w)
        in_specs = [
            pl.BlockSpec((tm, k), lambda i: (i, 0)),
            pl.BlockSpec((k, cout), lambda i: (0, 0)),        # resident weights
        ]
    else:
        kernel = functools.partial(_norm_mm_stats_kernel, m_valid=m_valid,
                                   precision=precision)
        args = (x, scale, shift, w)
        in_specs = [
            pl.BlockSpec((tm, k), lambda i: (i, 0)),
            pl.BlockSpec((1, k), lambda i: (0, 0)),           # resident BN scale
            pl.BlockSpec((1, k), lambda i: (0, 0)),           # resident BN shift
            pl.BlockSpec((k, cout), lambda i: (0, 0)),        # resident weights
        ]
    return pl.pallas_call(
        kernel,
        out_shape=(
            jax.ShapeDtypeStruct((m, cout), out_dtype),
            jax.ShapeDtypeStruct((n_tiles * STATS_ROWS, cout), jnp.float32),
            jax.ShapeDtypeStruct((n_tiles * STATS_ROWS, cout), jnp.float32),
        ),
        grid=(n_tiles,),
        in_specs=in_specs,
        out_specs=(
            pl.BlockSpec((tm, cout), lambda i: (i, 0)),
            pl.BlockSpec((STATS_ROWS, cout), lambda i: (i, 0)),
            pl.BlockSpec((STATS_ROWS, cout), lambda i: (i, 0)),
        ),
        compiler_params=pltpu.CompilerParams(dimension_semantics=("parallel",)),
    )(*args)


# ----------------------------------------------------------------------------
# Stage 2: 3x3 conv (stride 1, pad 1) with BN1+ReLU fused on the input.
# One image per grid step, flattened (H*W, C) layout:
#   * column (+-1) taps -> 128-aligned column bands of a VMEM staging buffer,
#     with the row-boundary wrap masked to zero (== zero spatial padding),
#   * row (+-1) taps -> accumulate into a W-row-offset window of the f32
#     accumulator, so only three (H*W, 3C) x (3C, C) matmuls are issued.
# (Shifts are staged through a ref window instead of concat/roll so every op
#  used here is a plain slice / windowed ref store with unambiguous semantics.)
# ----------------------------------------------------------------------------
def _conv3x3_stats_kernel(y1_ref, sc_ref, sh_ref, w_ref, y_ref, ps_ref, pq_ref,
                          cbuf_ref, acc_ref, *, W, precision):
    HW, cin = y1_ref.shape
    cdt = w_ref.dtype

    # Fused BN1 + ReLU (f32 math), then one cast to the MXU compute dtype.
    a = jnp.maximum(y1_ref[...].astype(jnp.float32) * sc_ref[...] + sh_ref[...],
                    0.0).astype(cdt)

    # Column index of each flattened (h*W + w) row, for the zero-padding masks.
    col = lax.broadcasted_iota(jnp.int32, (HW, 1), 0) % W
    zrow = jnp.zeros((1, cin), cdt)

    # Band 0: dx = 0.
    cbuf_ref[:, :cin] = a
    # Band 1: dx = +1  (operand[i] = a[i+1]; source rows in column 0 masked).
    keep_p = jnp.where(col != 0, a, 0.0)
    cbuf_ref[: HW - 1, cin:2 * cin] = keep_p[1:, :]
    cbuf_ref[HW - 1:, cin:2 * cin] = zrow
    # Band 2: dx = -1  (operand[i] = a[i-1]; source rows in column W-1 masked).
    keep_m = jnp.where(col != W - 1, a, 0.0)
    cbuf_ref[1:, 2 * cin:] = keep_m[: HW - 1, :]
    cbuf_ref[:1, 2 * cin:] = zrow

    # dy = 0 (kh = 1): full rows, plain store (no zero init needed).
    acc_ref[...] = jnp.dot(cbuf_ref[...], w_ref[1],
                           preferred_element_type=jnp.float32, precision=precision)
    # dy = +1 (kh = 2): out rows [0, HW-W) read operand rows [W, HW).
    acc_ref[: HW - W, :] += jnp.dot(cbuf_ref[W:, :], w_ref[2],
                                    preferred_element_type=jnp.float32,
                                    precision=precision)
    # dy = -1 (kh = 0): out rows [W, HW) read operand rows [0, HW-W).
    acc_ref[W:, :] += jnp.dot(cbuf_ref[: HW - W, :], w_ref[0],
                              preferred_element_type=jnp.float32,
                              precision=precision)

    _emit_y_and_stats(acc_ref[...], y_ref, ps_ref, pq_ref)


def conv3x3_stats(y1, scale, shift, w_cat, n_img, H, W, precision, out_dtype):
    HW = H * W
    cin = y1.shape[1]
    cout = w_cat.shape[-1]
    kernel = functools.partial(_conv3x3_stats_kernel, W=W, precision=precision)
    return pl.pallas_call(
        kernel,
        out_shape=(
            jax.ShapeDtypeStruct((n_img * HW, cout), out_dtype),
            jax.ShapeDtypeStruct((n_img * STATS_ROWS, cout), jnp.float32),
            jax.ShapeDtypeStruct((n_img * STATS_ROWS, cout), jnp.float32),
        ),
        grid=(n_img,),
        in_specs=[
            pl.BlockSpec((HW, cin), lambda i: (i, 0)),
            pl.BlockSpec((1, cin), lambda i: (0, 0)),
            pl.BlockSpec((1, cin), lambda i: (0, 0)),
            pl.BlockSpec((3, 3 * cin, cout), lambda i: (0, 0, 0)),  # resident taps
        ],
        out_specs=(
            pl.BlockSpec((HW, cout), lambda i: (i, 0)),
            pl.BlockSpec((STATS_ROWS, cout), lambda i: (i, 0)),
            pl.BlockSpec((STATS_ROWS, cout), lambda i: (i, 0)),
        ),
        scratch_shapes=[
            pltpu.VMEM((HW, 3 * cin), w_cat.dtype),     # banded dx operands
            pltpu.VMEM((HW, cout), jnp.float32),        # f32 conv accumulator
        ],
        compiler_params=pltpu.CompilerParams(dimension_semantics=("parallel",)),
    )(y1, scale, shift, w_cat)


# ----------------------------------------------------------------------------
# Final pass: BN3 + residual add + ReLU.
# ----------------------------------------------------------------------------
def _norm_res_kernel(y_ref, sc_ref, sh_ref, r_ref, o_ref):
    z = (y_ref[...].astype(jnp.float32) * sc_ref[...] + sh_ref[...]
         + r_ref[...].astype(jnp.float32))
    o_ref[...] = jnp.maximum(z, 0.0).astype(o_ref.dtype)


def normalize_residual(y, scale, shift, residual, tm, out_dtype):
    m, cout = y.shape
    n_tiles = pl.cdiv(m, tm)
    return pl.pallas_call(
        _norm_res_kernel,
        out_shape=jax.ShapeDtypeStruct((m, cout), out_dtype),
        grid=(n_tiles,),
        in_specs=[
            pl.BlockSpec((tm, cout), lambda i: (i, 0)),
            pl.BlockSpec((1, cout), lambda i: (0, 0)),
            pl.BlockSpec((1, cout), lambda i: (0, 0)),
            pl.BlockSpec((tm, cout), lambda i: (i, 0)),
        ],
        out_specs=pl.BlockSpec((tm, cout), lambda i: (i, 0)),
        compiler_params=pltpu.CompilerParams(dimension_semantics=("parallel",)),
    )(y, scale, shift, residual)


# ----------------------------------------------------------------------------
# Wrapper-side BN fold: global batch stats from per-tile f32 partials, folded
# into per-channel scale/shift.  (Conv biases cancel under batch-stat BN and
# are therefore dropped from the kernel path entirely.)
# ----------------------------------------------------------------------------
def _bn_fold(psum, psumsq, gamma, beta, count, eps):
    total = jnp.sum(psum, axis=0) / STATS_ROWS
    total_sq = jnp.sum(psumsq, axis=0) / STATS_ROWS
    mean = total / count
    var = jnp.maximum(total_sq / count - mean * mean, 0.0)   # guard cancellation
    inv = lax.rsqrt(var + eps)
    scale = gamma * inv
    shift = beta - mean * scale
    return scale.reshape(1, -1), shift.reshape(1, -1)


# ----------------------------------------------------------------------------
# Parameter packing: PyTorch OIHW conv weights -> lane-dense matmul layout.
# gamma/beta padded with 0 so padded channels stay exactly 0 through all stages.
# ----------------------------------------------------------------------------
def _pad2(a, r, c):
    return jnp.pad(a, ((0, r - a.shape[0]), (0, c - a.shape[1])))


def _pad1(a, c):
    return jnp.pad(a, (0, c - a.shape[0]))


def prepare_params(pt):
    planes = pt["w1"].shape[0]
    inplanes = pt["w1"].shape[1]
    cin_p = _round_up(inplanes, LANE)
    p_p = _round_up(planes, LANE)
    c4_p = _round_up(4 * planes, LANE)

    w1 = _pad2(pt["w1"][:, :, 0, 0].T, cin_p, p_p)                      # (Cin_p, P_p)
    w3 = _pad2(pt["w3"][:, :, 0, 0].T, p_p, c4_p)                       # (P_p, C4_p)

    # 3x3 weights: (O, I, kh, kw) -> per-kh matrices with the three kw taps
    # stacked along K in the band order used by the kernel: [kw=1, kw=2, kw=0].
    w2_t = jnp.transpose(pt["w2"], (2, 3, 1, 0))                        # (kh, kw, I, O)
    w2_t = jnp.pad(w2_t, ((0, 0), (0, 0), (0, p_p - planes), (0, p_p - planes)))
    w2 = jnp.stack(
        [jnp.concatenate([w2_t[kh, 1], w2_t[kh, 2], w2_t[kh, 0]], axis=0)
         for kh in range(3)], axis=0)                                   # (3, 3*P_p, P_p)

    return dict(
        planes=planes, inplanes=inplanes, cin_p=cin_p, p_p=p_p, c4_p=c4_p,
        w1=w1, w2=w2, w3=w3,
        g1=_pad1(pt["g1"], p_p), be1=_pad1(pt["be1"], p_p),
        g2=_pad1(pt["g2"], p_p), be2=_pad1(pt["be2"], p_p),
        g3=_pad1(pt["g3"], c4_p), be3=_pad1(pt["be3"], c4_p),
    )


# ----------------------------------------------------------------------------
# Bottleneck_org forward (stride=1, downsample=None -> identity residual)
# ----------------------------------------------------------------------------
def bottleneck_forward(x_nchw, params, eps=1e-5, compute_dtype=jnp.bfloat16, tm=1024):
    N, Cin, H, W = x_nchw.shape
    planes = params["planes"]
    cin_p, c4_p = params["cin_p"], params["c4_p"]
    assert Cin == params["inplanes"] == 4 * planes, "identity residual path only"
    assert cin_p == c4_p
    assert (H * W) % 8 == 0, "flattened image rows must be sublane aligned"

    M = N * H * W
    tm = min(tm, _round_up(M, 8))
    assert tm % 8 == 0

    cdt = compute_dtype
    precision = jax.lax.Precision.HIGHEST if cdt == jnp.float32 else None

    # NCHW -> NHWC -> (M, Cin) padded to 128 lanes; this single compute-dtype
    # copy feeds both the stage-1 matmul and the stage-3 residual add.
    x_flat = jnp.transpose(x_nchw, (0, 2, 3, 1)).reshape(M, Cin)
    if cin_p != Cin:
        x_flat = jnp.pad(x_flat, ((0, 0), (0, cin_p - Cin)))
    x_c = x_flat.astype(cdt)

    # ---- stage 1: 1x1 conv (+ BN1 partial stats) ----------------------------
    y1, ps1, pq1 = matmul_stats(x_c, params["w1"].astype(cdt), tm, precision, cdt)
    sc1, sh1 = _bn_fold(ps1, pq1, params["g1"], params["be1"], M, eps)

    # ---- stage 2: BN1+ReLU fused into the 3x3 conv (+ BN2 partial stats) ----
    y2, ps2, pq2 = conv3x3_stats(y1, sc1, sh1, params["w2"].astype(cdt),
                                 N, H, W, precision, cdt)
    sc2, sh2 = _bn_fold(ps2, pq2, params["g2"], params["be2"], M, eps)

    # ---- stage 3: BN2+ReLU fused into the 1x1 conv (+ BN3 partial stats) ----
    y3, ps3, pq3 = matmul_stats(y2, params["w3"].astype(cdt), tm, precision, cdt,
                                scale=sc2, shift=sh2)
    sc3, sh3 = _bn_fold(ps3, pq3, params["g3"], params["be3"], M, eps)

    # ---- BN3 + identity residual + ReLU --------------------------------------
    out = normalize_residual(y3, sc3, sh3, x_c, tm, jnp.float32)       # (M, C4_p)

    out = out[:, :4 * planes].reshape(N, H, W, 4 * planes)
    return jnp.transpose(out, (0, 3, 1, 2))


# ----------------------------------------------------------------------------
# Pure-JAX reference (NCHW, lax.conv, f32 HIGHEST precision) for validation
# ----------------------------------------------------------------------------
def reference_forward(x, pt, eps=1e-5):
    def conv(x, w, b, pad):
        y = jax.lax.conv_general_dilated(
            x, w, window_strides=(1, 1), padding=[(pad, pad), (pad, pad)],
            dimension_numbers=("NCHW", "OIHW", "NCHW"),
            precision=jax.lax.Precision.HIGHEST)
        return y + b.reshape(1, -1, 1, 1)

    def bn(x, g, be):
        mean = jnp.mean(x, axis=(0, 2, 3), keepdims=True)
        var = jnp.mean((x - mean) ** 2, axis=(0, 2, 3), keepdims=True)
        return (x - mean) * jax.lax.rsqrt(var + eps) * g.reshape(1, -1, 1, 1) \
            + be.reshape(1, -1, 1, 1)

    out = jax.nn.relu(bn(conv(x, pt["w1"], pt["b1"], 0), pt["g1"], pt["be1"]))
    out = jax.nn.relu(bn(conv(out, pt["w2"], pt["b2"], 1), pt["g2"], pt["be2"]))
    out = bn(conv(out, pt["w3"], pt["b3"], 0), pt["g3"], pt["be3"])
    return jax.nn.relu(out + x)


if __name__ == "__main__":
    key = jax.random.PRNGKey(0)
    N, H, W = 2, 16, 16
    planes = 8
    inplanes = planes * 4        # identity residual requires inplanes == planes*4
    ks = jax.random.split(key, 13)

    x = jax.random.normal(ks[0], (N, inplanes, H, W), jnp.float32)

    # PyTorch-shaped parameters (OIHW conv weights), deterministic init.
    pt = {
        "w1": jax.random.normal(ks[1], (planes, inplanes, 1, 1), jnp.float32) * 0.1,
        "b1": jax.random.normal(ks[2], (planes,), jnp.float32) * 0.1,
        "g1": 1.0 + 0.1 * jax.random.normal(ks[3], (planes,), jnp.float32),
        "be1": 0.1 * jax.random.normal(ks[4], (planes,), jnp.float32),
        "w2": jax.random.normal(ks[5], (planes, planes, 3, 3), jnp.float32) * 0.1,
        "b2": jax.random.normal(ks[6], (planes,), jnp.float32) * 0.1,
        "g2": 1.0 + 0.1 * jax.random.normal(ks[7], (planes,), jnp.float32),
        "be2": 0.1 * jax.random.normal(ks[8], (planes,), jnp.float32),
        "w3": jax.random.normal(ks[9], (4 * planes, planes, 1, 1), jnp.float32) * 0.1,
        "b3": jax.random.normal(ks[10], (4 * planes,), jnp.float32) * 0.1,
        "g3": 1.0 + 0.1 * jax.random.normal(ks[11], (4 * planes,), jnp.float32),
        "be3": 0.1 * jax.random.normal(ks[12], (4 * planes,), jnp.float32),
    }

    params = prepare_params(pt)
    ref = reference_forward(x, pt)

    # f32 compute path (tm=192 exercises multi-tile stats + partial-tile masking):
    # tight tolerance against the PyTorch-equivalent f32 reference.
    out_f32 = jax.block_until_ready(
        bottleneck_forward(x, params, compute_dtype=jnp.float32, tm=192))
    assert out_f32.shape == (N, inplanes, H, W), out_f32.shape
    err_f32 = float(jnp.max(jnp.abs(out_f32 - ref)))
    assert err_f32 < 5e-3, f"f32 max abs err {err_f32}"

    # bf16 compute path (default performance path): loose sanity check.
    out_bf16 = jax.block_until_ready(bottleneck_forward(x, params))
    assert out_bf16.shape == (N, inplanes, H, W), out_bf16.shape
    assert bool(jnp.all(jnp.isfinite(out_bf16)))
    err_bf16 = float(jnp.max(jnp.abs(out_bf16 - ref)))
    assert err_bf16 < 3.5e-1, f"bf16 max abs err {err_bf16}"

    print("KERNEL_OK")
</pallas_src>

<mosaic_0001>
module attributes {stable_mosaic.version = 11 : i64} {
  func.func @_mm_stats_kernel(%arg0: i32, %arg1: memref<192x128xf32, #tpu.memory_space<vmem>>, %arg2: memref<128x128xf32, #tpu.memory_space<vmem>>, %arg3: memref<192x128xf32, #tpu.memory_space<vmem>>, %arg4: memref<8x128xf32, #tpu.memory_space<vmem>>, %arg5: memref<8x128xf32, #tpu.memory_space<vmem>>) attributes {dimension_semantics = [#tpu.dimension_semantics<parallel>], iteration_bounds = array<i64: 3>, scalar_prefetch = 0 : i64, scratch_operands = 0 : i64, tpu.core_type = #tpu.core_type<tc>, window_params = [{transform_indices = @transform_0, window_bounds = array<i64: 192, 128>}, {pipeline_mode = #tpu.pipeline_mode<synchronous>, transform_indices = @transform_1, window_bounds = array<i64: 128, 128>}, {transform_indices = @transform_2, window_bounds = array<i64: 192, 128>}, {transform_indices = @transform_3, window_bounds = array<i64: 8, 128>}, {transform_indices = @transform_4, window_bounds = array<i64: 8, 128>}]} {
    %c0 = arith.constant 0 : index
    %c0_0 = arith.constant 0 : index
    %0 = vector.load %arg1[%c0, %c0_0] : memref<192x128xf32, #tpu.memory_space<vmem>>, vector<192x128xf32>
    %c0_1 = arith.constant 0 : index
    %c0_2 = arith.constant 0 : index
    %1 = vector.load %arg2[%c0_1, %c0_2] : memref<128x128xf32, #tpu.memory_space<vmem>>, vector<128x128xf32>
    %cst = arith.constant dense<0.000000e+00> : vector<192x128xf32>
    %2 = tpu.matmul %0, %1, %cst {dimension_numbers = #tpu.dot_dimension_numbers<[1], [0], [0], [1], [0, 0, 1, 1], [], []>, precision = #tpu.contract_precision<fp32>} : vector<192x128xf32>, vector<128x128xf32>, vector<192x128xf32> -> vector<192x128xf32>
    %c192_i32 = arith.constant 192 : i32
    %3 = arith.muli %arg0, %c192_i32 : i32
    %4 = tpu.iota {dimensions = array<i32: 0>} : vector<192x1xi32>
    %5 = vector.broadcast %3 : i32 to vector<192x1xi32>
    %6 = arith.addi %5, %4 : vector<192x1xi32>
    %c512_i32 = arith.constant 512 : i32
    %7 = vector.broadcast %c512_i32 : i32 to vector<192x1xi32>
    %8 = arith.cmpi slt, %6, %7 : vector<192x1xi32>
    %cst_3 = arith.constant 0.000000e+00 : f32
    %9 = vector.shape_cast %8 : vector<192x1xi1> to vector<192x1xi1>
    %10 = vector.broadcast %9 : vector<192x1xi1> to vector<192x128xi1>
    %11 = vector.broadcast %cst_3 : f32 to vector<192x128xf32>
    %12 = arith.select %10, %2, %11 : vector<192x128xi1>, vector<192x128xf32>
    %c0_4 = arith.constant 0 : index
    %c0_5 = arith.constant 0 : index
    %13 = vector.load %arg3[%c0_4, %c0_5] : memref<192x128xf32, #tpu.memory_space<vmem>>, vector<192x128xf32>
    tpu.vector_store %arg3[%c0_4, %c0_5], %12 {strides = array<i32>} : memref<192x128xf32, #tpu.memory_space<vmem>>, vector<192x128xf32>,
    %cst_6 = arith.constant dense<0.000000e+00> : vector<128xf32>
    %14 = vector.multi_reduction <add>, %12, %cst_6 [0] : vector<192x128xf32> to vector<128xf32>
    %15 = vector.shape_cast %14 : vector<128xf32> to vector<1x128xf32>
    %16 = arith.mulf %12, %12 : vector<192x128xf32>
    %cst_7 = arith.constant dense<0.000000e+00> : vector<128xf32>
    %17 = vector.multi_reduction <add>, %16, %cst_7 [0] : vector<192x128xf32> to vector<128xf32>
    %18 = vector.shape_cast %17 : vector<128xf32> to vector<1x128xf32>
    %19 = vector.shape_cast %15 : vector<1x128xf32> to vector<1x128xf32>
    %20 = vector.broadcast %19 : vector<1x128xf32> to vector<8x128xf32>
    %c0_8 = arith.constant 0 : index
    %c0_9 = arith.constant 0 : index
    %21 = vector.load %arg4[%c0_8, %c0_9] : memref<8x128xf32, #tpu.memory_space<vmem>>, vector<8x128xf32>
    tpu.vector_store %arg4[%c0_8, %c0_9], %20 {strides = array<i32>} : memref<8x128xf32, #tpu.memory_space<vmem>>, vector<8x128xf32>,
    %22 = vector.shape_cast %18 : vector<1x128xf32> to vector<1x128xf32>
    %23 = vector.broadcast %22 : vector<1x128xf32> to vector<8x128xf32>
    %c0_10 = arith.constant 0 : index
    %c0_11 = arith.constant 0 : index
    %24 = vector.load %arg5[%c0_10, %c0_11] : memref<8x128xf32, #tpu.memory_space<vmem>>, vector<8x128xf32>
    tpu.vector_store %arg5[%c0_10, %c0_11], %23 {strides = array<i32>} : memref<8x128xf32, #tpu.memory_space<vmem>>, vector<8x128xf32>,
    return
  }
  func.func @transform_0(%arg0: i32) -> (i32, i32) {
    %c0_i32 = arith.constant 0 : i32
    %c0_i32_0 = arith.constant 0 : i32
    return %arg0, %c0_i32 : i32, i32
  }
  func.func @transform_1(%arg0: i32) -> (i32, i32) {
    %c0_i32 = arith.constant 0 : i32
    %c0_i32_0 = arith.constant 0 : i32
    %c0_i32_1 = arith.constant 0 : i32
    return %c0_i32, %c0_i32_0 : i32, i32
  }
  func.func @transform_2(%arg0: i32) -> (i32, i32) {
    %c0_i32 = arith.constant 0 : i32
    %c0_i32_0 = arith.constant 0 : i32
    return %arg0, %c0_i32 : i32, i32
  }
  func.func @transform_3(%arg0: i32) -> (i32, i32) {
    %c0_i32 = arith.constant 0 : i32
    %c0_i32_0 = arith.constant 0 : i32
    return %arg0, %c0_i32 : i32, i32
  }
  func.func @transform_4(%arg0: i32) -> (i32, i32) {
    %c0_i32 = arith.constant 0 : i32
    %c0_i32_0 = arith.constant 0 : i32
    return %arg0, %c0_i32 : i32, i32
  }
}

</mosaic_0001>

<llo_original>
// kernel: tpu_custom_call.1
$region0: #{tpu_custom_call.1}
  #allocation0 [shape = 'u32[]', space=smem, size = 0x4, offset = 0x4, fixed_abs, tag = 'smem constant byte address 0x4 - core index']
  #allocation1 [shape = 'u32[144,128]{1,0:T(1,128)}', space=vmem, size = 0x12000, scoped, tag = 'internal scratch']
  %s0 = inlined_call_operand.hbm [shape: f32[512,128], index: 0, kind: input, shape index: {}]
  %s1 = inlined_call_operand.hbm [shape: f32[128,128], index: 1, kind: input, shape index: {}]
  %s2 = inlined_call_operand.hbm [shape: f32[512,128], index: 2, kind: output, shape index: {0}]
  %s3 = inlined_call_operand.hbm [shape: f32[24,128], index: 3, kind: output, shape index: {1}]
  %s4 = inlined_call_operand.hbm [shape: f32[24,128], index: 4, kind: output, shape index: {2}]
  %5 = xla_tuple %s2, %s3, %s4
  %s6 = sld [smem:[#allocation0]]
  $region65: #{tpu_custom_call.1} parent=0
    _
  %s8 = ssub.s32 1, %s6
  %s9 = scalar_select 0, %s8, %s6
  $region1: #{tpu_custom_call.1} parent=0
    #allocation2 [shape = 'u8[196608]{0}', space=vmem, size = 0x30000, scoped, tag = 'input window, operand 0']
    #allocation3 [shape = 's32[2]{0}', space=sflag, size = 0x8, scoped, tag = 'scoped memory for tpu_custom_call.1']
    #allocation4 [shape = 's32[2]{0}', space=sflag, size = 0x8, scoped, tag = 'scoped memory for tpu_custom_call.1']
    #allocation5 [shape = 'u8[65536]{0}', space=vmem, size = 0x10000, scoped, tag = 'input window, operand 1, single buffered']
    #allocation6 [shape = 's32[1]{0}', space=sflag, size = 0x4, scoped, tag = 'scoped memory for tpu_custom_call.1']
    #allocation7 [shape = 'u8[196608]{0}', space=vmem, size = 0x30000, scoped, tag = 'output window, operand 0']
    #allocation8 [shape = 'u8[8192]{0}', space=vmem, size = 0x2000, scoped, tag = 'output window, operand 1']
    #allocation9 [shape = 's32[2]{0}', space=sflag, size = 0x8, scoped, tag = 'scoped memory for tpu_custom_call.1']
    #allocation10 [shape = 'u8[8192]{0}', space=vmem, size = 0x2000, scoped, tag = 'output window, operand 2']
    %10 = vsyncpa [#allocation3], 0
    %s11 = scalar_lea.sflag [#allocation3], 1
    %12 = vsyncpa %s11, 0
    %13 = vsyncpa [#allocation6], 0
    %14 = vsyncpa [#allocation4], 0
    %s15 = scalar_lea.sflag [#allocation4], 1
    %16 = vsyncpa %s15, 0
    %17 = vsyncpa [#allocation9], 0
    %s18 = scalar_lea.sflag [#allocation9], 1
    %19 = vsyncpa %s18, 0
    loop: start=0, step=1, limit=5
    $region2: #{tpu_custom_call.1} parent=1 // loop_pre_header
      _
    $region3: #{tpu_custom_call.1} parent=1 // loop_header
      %s21 = sphi 0, %s25
      %p22 = scmp.ge.s32.totalorder %s21, 5
      %s31 = sphi 0, %s33
      %s34 = sphi 0, %s31
      %s35 = sphi 0, %s34
      %s51 = sphi 0, %s35
      %s55 = sphi 0, %s55
      %s57 = sphi 0, %s55
      %s58 = sphi 0, %s57
      %s72 = sphi 0, %s58
      %s78 = sphi 0, %s80
      %s81 = sphi 0, %s78
      %s82 = sphi 0, %s81
      %s98 = sphi 0, %s82
      %s104 = sphi 0, %s106
      %s107 = sphi 0, %s104
      %s108 = sphi 0, %s107
      %s124 = sphi 0, %s108
      %s130 = sphi 0, %s132
      %s133 = sphi 0, %s130
      %s134 = sphi 0, %s133
      %s150 = sphi 0, %s134
    $region4: #{tpu_custom_call.1} parent=1 // loop_header_branch
      %24 = sbr.rel (%p22) target = $region8
    $region5: #{tpu_custom_call.1} parent=1 // loop_body
      %s26 = ssub.s32 %s21, 1
      %s27 = ssub.s32 %s21, 2
      %s28 = sadd.s32 %s21, 1
      %s29 = ssub.s32 %s21, %s28
      %p30 = scmp.eq.s32.totalorder %s29, 0
      %s32 = sadd.s32 %s31, 1
      %s33 = scalar_select %p30, %s31, %s32
      %p36 = pneg %p30
      %p37 = scmp.eq.s32.totalorder %s21, 2
      %p38 = por %p36, %p37
      %p39 = scmp.ne.s32.totalorder %s31, %s34
      %p40 = scmp.eq.s32.totalorder %s21, 0
      %p41 = por %p39, %p40
      %p42 = scmp.ne.s32.totalorder %s31, %s34
      %p43 = scmp.eq.s32.totalorder %s26, 2
      %p44 = por %p42, %p43
      %p45 = scmp.ne.s32.totalorder %s34, %s35
      %p46 = scmp.eq.s32.totalorder %s26, 0
      %p47 = por %p45, %p46
      %p48 = scmp.ne.s32.totalorder %s34, %s35
      %p49 = scmp.eq.s32.totalorder %s27, 2
      %p50 = por %p48, %p49
      %p52 = scmp.ne.s32.totalorder %s35, %s51
      %p53 = scmp.eq.s32.totalorder %s27, 0
      %p54 = por %p52, %p53
      %s56 = sadd.s32 %s55, 1
      %p59 = scmp.eq.s32.totalorder %s21, 2
      %p60 = scmp.ne.s32.totalorder %s55, %s57
      %p61 = scmp.eq.s32.totalorder %s21, 0
      %p62 = por %p60, %p61
      %p63 = scmp.ne.s32.totalorder %s55, %s57
      %p64 = scmp.eq.s32.totalorder %s26, 2
      %p65 = por %p63, %p64
      %p66 = scmp.ne.s32.totalorder %s57, %s58
      %p67 = scmp.eq.s32.totalorder %s26, 0
      %p68 = por %p66, %p67
      %p69 = scmp.ne.s32.totalorder %s57, %s58
      %p70 = scmp.eq.s32.totalorder %s27, 2
      %p71 = por %p69, %p70
      %p73 = scmp.ne.s32.totalorder %s58, %s72
      %p74 = scmp.eq.s32.totalorder %s27, 0
      %p75 = por %p73, %p74
      %s76 = ssub.s32 %s21, %s28
      %p77 = scmp.eq.s32.totalorder %s76, 0
      %s79 = sadd.s32 %s78, 1
      %s80 = scalar_select %p77, %s78, %s79
      %p83 = pneg %p77
      %p84 = scmp.eq.s32.totalorder %s21, 2
      %p85 = por %p83, %p84
      %p86 = scmp.ne.s32.totalorder %s78, %s81
      %p87 = scmp.eq.s32.totalorder %s21, 0
      %p88 = por %p86, %p87
      %p89 = scmp.ne.s32.totalorder %s78, %s81
      %p90 = scmp.eq.s32.totalorder %s26, 2
      %p91 = por %p89, %p90
      %p92 = scmp.ne.s32.totalorder %s81, %s82
      %p93 = scmp.eq.s32.totalorder %s26, 0
      %p94 = por %p92, %p93
      %p95 = scmp.ne.s32.totalorder %s81, %s82
      %p96 = scmp.eq.s32.totalorder %s27, 2
      %p97 = por %p95, %p96
      %p99 = scmp.ne.s32.totalorder %s82, %s98
      %p100 = scmp.eq.s32.totalorder %s27, 0
      %p101 = por %p99, %p100
      %s102 = ssub.s32 %s21, %s28
      %p103 = scmp.eq.s32.totalorder %s102, 0
      %s105 = sadd.s32 %s104, 1
      %s106 = scalar_select %p103, %s104, %s105
      %p109 = pneg %p103
      %p110 = scmp.eq.s32.totalorder %s21, 2
      %p111 = por %p109, %p110
      %p112 = scmp.ne.s32.totalorder %s104, %s107
      %p113 = scmp.eq.s32.totalorder %s21, 0
      %p114 = por %p112, %p113
      %p115 = scmp.ne.s32.totalorder %s104, %s107
      %p116 = scmp.eq.s32.totalorder %s26, 2
      %p117 = por %p115, %p116
      %p118 = scmp.ne.s32.totalorder %s107, %s108
      %p119 = scmp.eq.s32.totalorder %s26, 0
      %p120 = por %p118, %p119
      %p121 = scmp.ne.s32.totalorder %s107, %s108
      %p122 = scmp.eq.s32.totalorder %s27, 2
      %p123 = por %p121, %p122
      %p125 = scmp.ne.s32.totalorder %s108, %s124
      %p126 = scmp.eq.s32.totalorder %s27, 0
      %p127 = por %p125, %p126
      %s128 = ssub.s32 %s21, %s28
      %p129 = scmp.eq.s32.totalorder %s128, 0
      %s131 = sadd.s32 %s130, 1
      %s132 = scalar_select %p129, %s130, %s131
      %p135 = pneg %p129
      %p136 = scmp.eq.s32.totalorder %s21, 2
      %p137 = por %p135, %p136
      %p138 = scmp.ne.s32.totalorder %s130, %s133
      %p139 = scmp.eq.s32.totalorder %s21, 0
      %p140 = por %p138, %p139
      %p141 = scmp.ne.s32.totalorder %s130, %s133
      %p142 = scmp.eq.s32.totalorder %s26, 2
      %p143 = por %p141, %p142
      %p144 = scmp.ne.s32.totalorder %s133, %s134
      %p145 = scmp.eq.s32.totalorder %s26, 0
      %p146 = por %p144, %p145
      %p147 = scmp.ne.s32.totalorder %s133, %s134
      %p148 = scmp.eq.s32.totalorder %s27, 2
      %p149 = por %p147, %p148
      %p151 = scmp.ne.s32.totalorder %s134, %s150
      %p152 = scmp.eq.s32.totalorder %s27, 0
      %p153 = por %p151, %p152
      %p154 = scmp.le.s32.totalorder 1, %s21
      %p155 = scmp.lt.s32.totalorder %s21, 4
      %p156 = pnand %p154, %p155
      %p157 = pneg %p156
      // Predicated region
      $region9: #{tpu_custom_call.1} parent=5 // pred_check
        _
      $region10: #{tpu_custom_call.1} parent=5 // pred_check_branch
        %159 = sbr.rel (%p156) target = $region12
      $region11: #{tpu_custom_call.1} parent=5 // pred_region
        %s160 = ssub.s32 %s21, 1
        // Predicated region
        $region13: #{tpu_custom_call.1} parent=11 // pred_check
          %p161 = pneg %p68
        $region14: #{tpu_custom_call.1} parent=11 // pred_check_branch
          %163 = sbr.rel (%p161) target = $region16
        $region15: #{tpu_custom_call.1} parent=11 // pred_region
          %s165 = ssub.s32 2048, 2048
          %166 = vsyncadd [#allocation6], %s165
          %s167 = sshll.u32 [#allocation5], 4
          %s168 = int_to_ptr.vmem [resolvable:$true] %s167
          %173 = dma.hbm_to_vmem [thread:$0]  %s1, 2048, %s168, [#allocation6], 128, 128, 8
        $region16: #{tpu_custom_call.1} parent=11 // pred_fallthru
          _
      $region12: #{tpu_custom_call.1} parent=5 // pred_fallthru
        _
      %p174 = scmp.lt.s32.totalorder %s21, 3
      // Predicated region
      $region17: #{tpu_custom_call.1} parent=5 // pred_check
        %p175 = pneg %p174
      $region18: #{tpu_custom_call.1} parent=5 // pred_check_branch
        %177 = sbr.rel (%p175) target = $region20
      $region19: #{tpu_custom_call.1} parent=5 // pred_region
        // Predicated region
        $region21: #{tpu_custom_call.1} parent=19 // pred_check
          %p178 = pneg %p41
        $region22: #{tpu_custom_call.1} parent=19 // pred_check_branch
          %180 = sbr.rel (%p178) target = $region24
        $region23: #{tpu_custom_call.1} parent=19 // pred_region
          %s181 = sand.u32 %s31, 1
          %s182 = scalar_lea.sflag [#allocation3], %s181
          %s183 = sand.u32 %s31, 1
          %s184 = smul.addr %s183, 192
          %s185 = scalar_lea.vmem [#allocation2], %s184
          %s186 = smul.u32 24, %s21
          %s187 = ssub.s32 64, %s186
          %p188 = scmp.lt.s32.totalorder %s187, 24
          %s189 = scalar_select %p188, %s187, 24
          %s190 = smul.u32 128, %s189
          %s192 = ssub.s32 3072, %s190
          %193 = vsyncadd %s182, %s192
          %p194 = scmp.ne.s32.totalorder 0, %s190
          %s195 = smul.addr %s186, 128
          %s196 = scalar_lea.hbm %s0, %s195
          %s197 = smul.u32 8, %s189
          %s198 = sshll.u32 %s185, 4
          %s199 = int_to_ptr.vmem [resolvable:$true] %s198
          %s200 = sshll.u32 %s197, 4
          %204 = dma.hbm_to_vmem [thread:$0]  (%p194), %s196, %s200, %s199, %s182, 128, 128, 8
        $region24: #{tpu_custom_call.1} parent=19 // pred_fallthru
          _
      $region20: #{tpu_custom_call.1} parent=5 // pred_fallthru
        _
      %p205 = scmp.le.s32.totalorder 1, %s21
      %p206 = scmp.lt.s32.totalorder %s21, 4
      %p207 = pnand %p205, %p206
      %p208 = pneg %p207
      // Predicated region
      $region25: #{tpu_custom_call.1} parent=5 // pred_check
        _
      $region26: #{tpu_custom_call.1} parent=5 // pred_check_branch
        %210 = sbr.rel (%p207) target = $region28
      $region27: #{tpu_custom_call.1} parent=5 // pred_region
        %s211 = ssub.s32 %s21, 1
        %s212 = sand.u32 %s34, 1
        %s213 = scalar_lea.sflag [#allocation3], %s212
        %s214 = sand.u32 %s34, 1
        %s215 = smul.addr %s214, 192
        %s216 = scalar_lea.vmem [#allocation2], %s215
        // Predicated region
        $region29: #{tpu_custom_call.1} parent=27 // pred_check
          %p217 = pneg %p47
        $region30: #{tpu_custom_call.1} parent=27 // pred_check_branch
          %219 = sbr.rel (%p217) target = $region32
        $region31: #{tpu_custom_call.1} parent=27 // pred_region
          %220 = dma.done %s213, 3072
        $region32: #{tpu_custom_call.1} parent=27 // pred_fallthru
          _
        // Predicated region
        $region33: #{tpu_custom_call.1} parent=27 // pred_check
          %p221 = pneg %p68
        $region34: #{tpu_custom_call.1} parent=27 // pred_check_branch
          %223 = sbr.rel (%p221) target = $region36
        $region35: #{tpu_custom_call.1} parent=27 // pred_region
          %224 = dma.done [#allocation6], 2048
        $region36: #{tpu_custom_call.1} parent=27 // pred_fallthru
          _
        %s225 = sand.u32 %s34, 1
        %s226 = scalar_lea.sflag [#allocation3], %s225
        %s227 = sand.u32 %s34, 1
        %s228 = smul.addr %s227, 192
        %s229 = scalar_lea.vmem [#allocation2], %s228
        %p230 = pneg %p47
        %p231 = pneg %p44
        %p232 = pneg %p68
        %p233 = pneg %p65
        %p234 = pneg %p94
        %p235 = pneg %p91
        %s236 = sand.u32 %s81, 1
        %s237 = scalar_lea.sflag [#allocation4], %s236
        %s238 = sand.u32 %s81, 1
        %s239 = smul.addr %s238, 192
        %s240 = scalar_lea.vmem [#allocation7], %s239
        %p241 = pneg %p120
        %p242 = pneg %p117
        %s243 = sand.u32 %s26, 1
        %s244 = scalar_lea.sflag [#allocation9], %s243
        %s245 = sand.u32 %s107, 1
        %s246 = smul.addr %s245, 8
        %s247 = scalar_lea.vmem [#allocation8], %s246
        %p248 = pneg %p146
        %p249 = pneg %p143
        %s250 = sand.u32 %s26, 1
        %s251 = scalar_lea.sflag [#allocation9], %s250
        %s252 = sand.u32 %s133, 1
        %s253 = smul.addr %s252, 8
        %s254 = scalar_lea.vmem [#allocation10], %s253
        %s255 = smul.u32 24, %s26
        %s256 = ssub.s32 64, %s255
        %p257 = scmp.lt.s32.totalorder %s256, 24
        %s258 = scalar_select %p257, %s256, 24
        %s259 = smul.u32 128, %s258
        %s260 = smul.u32 24, %s26
        %s261 = ssub.s32 64, %s260
        %p262 = scmp.lt.s32.totalorder %s261, 24
        %s263 = scalar_select %p262, %s261, 24
        %s264 = smul.u32 128, %s263
        %v265 = vld [vmem:[%s216] sm:$0xff]
        %v266 = vld [vmem:[%s216 + $0x8] sm:$0xff]
        %v267 = vld [vmem:[%s216 + $0x10] sm:$0xff]
        %v268 = vld [vmem:[%s216 + $0x18] sm:$0xff]
        %v269 = vld [vmem:[%s216 + $0x20] sm:$0xff]
        %v270 = vld [vmem:[%s216 + $0x28] sm:$0xff]
        %v271 = vld [vmem:[%s216 + $0x30] sm:$0xff]
        %v272 = vld [vmem:[%s216 + $0x38] sm:$0xff]
        %v273 = vld [vmem:[%s216 + $0x40] sm:$0xff]
        %v274 = vld [vmem:[%s216 + $0x48] sm:$0xff]
        %v275 = vld [vmem:[%s216 + $0x50] sm:$0xff]
        %v276 = vld [vmem:[%s216 + $0x58] sm:$0xff]
        %v277 = vld [vmem:[%s216 + $0x60] sm:$0xff]
        %v278 = vld [vmem:[%s216 + $0x68] sm:$0xff]
        %v279 = vld [vmem:[%s216 + $0x70] sm:$0xff]
        %v280 = vld [vmem:[%s216 + $0x78] sm:$0xff]
        %v281 = vld [vmem:[%s216 + $0x80] sm:$0xff]
        %v282 = vld [vmem:[%s216 + $0x88] sm:$0xff]
        %v283 = vld [vmem:[%s216 + $0x90] sm:$0xff]
        %v284 = vld [vmem:[%s216 + $0x98] sm:$0xff]
        %v285 = vld [vmem:[%s216 + $0xa0] sm:$0xff]
        %v286 = vld [vmem:[%s216 + $0xa8] sm:$0xff]
        %v287 = vld [vmem:[%s216 + $0xb0] sm:$0xff]
        %v288 = vld [vmem:[%s216 + $0xb8] sm:$0xff]
        %v289 = vld [vmem:[#allocation5] sm:$0xff]
        %v290 = vld [vmem:[#allocation5 + $0x8] sm:$0xff]
        %v291 = vld [vmem:[#allocation5 + $0x10] sm:$0xff]
        %v292 = vld [vmem:[#allocation5 + $0x18] sm:$0xff]
        %v293 = vld [vmem:[#allocation5 + $0x20] sm:$0xff]
        %v294 = vld [vmem:[#allocation5 + $0x28] sm:$0xff]
        %v295 = vld [vmem:[#allocation5 + $0x30] sm:$0xff]
        %v296 = vld [vmem:[#allocation5 + $0x38] sm:$0xff]
        %v297 = vld [vmem:[#allocation5 + $0x40] sm:$0xff]
        %v298 = vld [vmem:[#allocation5 + $0x48] sm:$0xff]
        %v299 = vld [vmem:[#allocation5 + $0x50] sm:$0xff]
        %v300 = vld [vmem:[#allocation5 + $0x58] sm:$0xff]
        %v301 = vld [vmem:[#allocation5 + $0x60] sm:$0xff]
        %v302 = vld [vmem:[#allocation5 + $0x68] sm:$0xff]
        %v303 = vld [vmem:[#allocation5 + $0x70] sm:$0xff]
        %v304 = vld [vmem:[#allocation5 + $0x78] sm:$0xff]
        %305 = vmatprep.subr.mxu0 0.0
        %v306 = vand.u32 %v289, 4294901760
        %307 = vmatpush1.msra.mxu0 %v306
        %308 = vmatprep.subr.mxu0 0.0
        %v309 = vand.u32 %v290, 4294901760
        %310 = vmatpush1.msra.mxu0 %v309
        %311 = vmatprep.subr.mxu0 0.0
        %v312 = vand.u32 %v291, 4294901760
        %313 = vmatpush1.msra.mxu0 %v312
        %314 = vmatprep.subr.mxu0 0.0
        %v315 = vand.u32 %v292, 4294901760
        %316 = vmatpush1.msra.mxu0 %v315
        %317 = vmatprep.subr.mxu0 0.0
        %v318 = vand.u32 %v293, 4294901760
        %319 = vmatpush1.msra.mxu0 %v318
        %320 = vmatprep.subr.mxu0 0.0
        %v321 = vand.u32 %v294, 4294901760
        %322 = vmatpush1.msra.mxu0 %v321
        %323 = vmatprep.subr.mxu0 0.0
        %v324 = vand.u32 %v295, 4294901760
        %325 = vmatpush1.msra.mxu0 %v324
        %326 = vmatprep.subr.mxu0 0.0
        %v327 = vand.u32 %v296, 4294901760
        %328 = vmatpush1.msra.mxu0 %v327
        %329 = vmatprep.subr.mxu0 0.0
        %v330 = vand.u32 %v297, 4294901760
        %331 = vmatpush1.msra.mxu0 %v330
        %332 = vmatprep.subr.mxu0 0.0
        %v333 = vand.u32 %v298, 4294901760
        %334 = vmatpush1.msra.mxu0 %v333
        %335 = vmatprep.subr.mxu0 0.0
        %v336 = vand.u32 %v299, 4294901760
        %337 = vmatpush1.msra.mxu0 %v336
        %338 = vmatprep.subr.mxu0 0.0
        %v339 = vand.u32 %v300, 4294901760
        %340 = vmatpush1.msra.mxu0 %v339
        %341 = vmatprep.subr.mxu0 0.0
        %v342 = vand.u32 %v301, 4294901760
        %343 = vmatpush1.msra.mxu0 %v342
        %344 = vmatprep.subr.mxu0 0.0
        %v345 = vand.u32 %v302, 4294901760
        %346 = vmatpush1.msra.mxu0 %v345
        %347 = vmatprep.subr.mxu0 0.0
        %v348 = vand.u32 %v303, 4294901760
        %349 = vmatpush1.msra.mxu0 %v348
        %350 = vmatprep.subr.mxu0 0.0
        %v351 = vand.u32 %v304, 4294901760
        %352 = vmatpush1.msra.mxu0 %v351
        %353 = vmatprep.subr.mxu0 0.0
        %354 = vmatpush1.msra.mxu0 0.0
        %355 = vmatprep.subr.mxu0 0.0
        %356 = vmatpush1.msra.mxu0 0.0
        %357 = vmatprep.subr.mxu0 0.0
        %358 = vmatpush1.msra.mxu0 0.0
        %359 = vmatprep.subr.mxu0 0.0
        %360 = vmatpush1.msra.mxu0 0.0
        %361 = vmatprep.subr.mxu0 0.0
        %362 = vmatpush1.msra.mxu0 0.0
        %363 = vmatprep.subr.mxu0 0.0
        %364 = vmatpush1.msra.mxu0 0.0
        %365 = vmatprep.subr.mxu0 0.0
        %366 = vmatpush1.msra.mxu0 0.0
        %367 = vmatprep.subr.mxu0 0.0
        %368 = vmatpush1.msra.mxu0 0.0
        %369 = vmatprep.subr.mxu0 0.0
        %370 = vmatpush1.msra.mxu0 0.0
        %371 = vmatprep.subr.mxu0 0.0
        %372 = vmatpush1.msra.mxu0 0.0
        %373 = vmatprep.subr.mxu0 0.0
        %374 = vmatpush1.msra.mxu0 0.0
        %375 = vmatprep.subr.mxu0 0.0
        %376 = vmatpush1.msra.mxu0 0.0
        %377 = vmatprep.subr.mxu0 0.0
        %378 = vmatpush1.msra.mxu0 0.0
        %379 = vmatprep.subr.mxu0 0.0
        %380 = vmatpush1.msra.mxu0 0.0
        %381 = vmatprep.subr.mxu0 0.0
        %382 = vmatpush1.msra.mxu0 0.0
        %383 = vmatprep.subr.mxu0 0.0
        %384 = vmatpush1.msra.mxu0 0.0
        %385 = vmatprep.mubr.f32.mxu0 0.0
        %v386 = vand.u32 %v265, 4294901760
        %v387 = vsub.f32 %v265, %v386
        %v388 = vand.u32 %v387, 4294901760
        %v389 = vsub.f32 %v387, %v388
        %v390 = vand.u32 %v389, 4294901760
        %391 = vmatmul.mubr.f32.gmra.mrb[0].mxu0 %v390
        %v392 = vpop.f32.mrb[0].mxu0
        %v393 = vadd.f32 0.0, %v392
        %v394 = vpop.f32.mrb[0].mxu0
        %395 = vmatprep.mubr.f32.mxu0 0.0
        %v396 = vand.u32 %v266, 4294901760
        %v397 = vsub.f32 %v266, %v396
        %v398 = vand.u32 %v397, 4294901760
        %v399 = vsub.f32 %v397, %v398
        %v400 = vand.u32 %v399, 4294901760
        %401 = vmatmul.mubr.f32.gmra.mrb[0].mxu0 %v400
        %v402 = vpop.f32.mrb[0].mxu0
        %v403 = vadd.f32 0.0, %v402
        %v404 = vpop.f32.mrb[0].mxu0
        %405 = vmatprep.mubr.f32.mxu0 0.0
        %v406 = vand.u32 %v267, 4294901760
        %v407 = vsub.f32 %v267, %v406
        %v408 = vand.u32 %v407, 4294901760
        %v409 = vsub.f32 %v407, %v408
        %v410 = vand.u32 %v409, 4294901760
        %411 = vmatmul.mubr.f32.gmra.mrb[0].mxu0 %v410
        %v412 = vpop.f32.mrb[0].mxu0
        %v413 = vadd.f32 0.0, %v412
        %v414 = vpop.f32.mrb[0].mxu0
        %415 = vmatprep.mubr.f32.mxu0 0.0
        %v416 = vand.u32 %v268, 4294901760
        %v417 = vsub.f32 %v268, %v416
        %v418 = vand.u32 %v417, 4294901760
        %v419 = vsub.f32 %v417, %v418
        %v420 = vand.u32 %v419, 4294901760
        %421 = vmatmul.mubr.f32.gmra.mrb[0].mxu0 %v420
        %v422 = vpop.f32.mrb[0].mxu0
        %v423 = vadd.f32 0.0, %v422
        %v424 = vpop.f32.mrb[0].mxu0
        %425 = vmatprep.mubr.f32.mxu0 0.0
        %v426 = vand.u32 %v269, 4294901760
        %v427 = vsub.f32 %v269, %v426
        %v428 = vand.u32 %v427, 4294901760
        %v429 = vsub.f32 %v427, %v428
        %v430 = vand.u32 %v429, 4294901760
        %431 = vmatmul.mubr.f32.gmra.mrb[0].mxu0 %v430
        %v432 = vpop.f32.mrb[0].mxu0
        %v433 = vadd.f32 0.0, %v432
        %v434 = vpop.f32.mrb[0].mxu0
        %435 = vmatprep.mubr.f32.mxu0 0.0
        %v436 = vand.u32 %v270, 4294901760
        %v437 = vsub.f32 %v270, %v436
        %v438 = vand.u32 %v437, 4294901760
        %v439 = vsub.f32 %v437, %v438
        %v440 = vand.u32 %v439, 4294901760
        %441 = vmatmul.mubr.f32.gmra.mrb[0].mxu0 %v440
        %v442 = vpop.f32.mrb[0].mxu0
        %v443 = vadd.f32 0.0, %v442
        %v444 = vpop.f32.mrb[0].mxu0
        %445 = vmatprep.mubr.f32.mxu0 0.0
        %v446 = vand.u32 %v271, 4294901760
        %v447 = vsub.f32 %v271, %v446
        %v448 = vand.u32 %v447, 4294901760
        %v449 = vsub.f32 %v447, %v448
        %v450 = vand.u32 %v449, 4294901760
        %451 = vmatmul.mubr.f32.gmra.mrb[0].mxu0 %v450
        %v452 = vpop.f32.mrb[0].mxu0
        %v453 = vadd.f32 0.0, %v452
        %v454 = vpop.f32.mrb[0].mxu0
        %455 = vmatprep.mubr.f32.mxu0 0.0
        %v456 = vand.u32 %v272, 4294901760
        %v457 = vsub.f32 %v272, %v456
        %v458 = vand.u32 %v457, 4294901760
        %v459 = vsub.f32 %v457, %v458
        %v460 = vand.u32 %v459, 4294901760
        %461 = vmatmul.mubr.f32.gmra.mrb[0].mxu0 %v460
        %v462 = vpop.f32.mrb[0].mxu0
        %v463 = vadd.f32 0.0, %v462
        %v464 = vpop.f32.mrb[0].mxu0
        %465 = vmatprep.mubr.f32.mxu0 0.0
        %v466 = vand.u32 %v273, 4294901760
        %v467 = vsub.f32 %v273, %v466
        %v468 = vand.u32 %v467, 4294901760
        %v469 = vsub.f32 %v467, %v468
        %v470 = vand.u32 %v469, 4294901760
        %471 = vmatmul.mubr.f32.gmra.mrb[0].mxu0 %v470
        %v472 = vpop.f32.mrb[0].mxu0
        %v473 = vadd.f32 0.0, %v472
        %v474 = vpop.f32.mrb[0].mxu0
        %475 = vmatprep.mubr.f32.mxu0 0.0
        %v476 = vand.u32 %v274, 4294901760
        %v477 = vsub.f32 %v274, %v476
        %v478 = vand.u32 %v477, 4294901760
        %v479 = vsub.f32 %v477, %v478
        %v480 = vand.u32 %v479, 4294901760
        %481 = vmatmul.mubr.f32.gmra.mrb[0].mxu0 %v480
        %v482 = vpop.f32.mrb[0].mxu0
        %v483 = vadd.f32 0.0, %v482
        %v484 = vpop.f32.mrb[0].mxu0
        %485 = vmatprep.mubr.f32.mxu0 0.0
        %v486 = vand.u32 %v275, 4294901760
        %v487 = vsub.f32 %v275, %v486
        %v488 = vand.u32 %v487, 4294901760
        %v489 = vsub.f32 %v487, %v488
        %v490 = vand.u32 %v489, 4294901760
        %491 = vmatmul.mubr.f32.gmra.mrb[0].mxu0 %v490
        %v492 = vpop.f32.mrb[0].mxu0
        %v493 = vadd.f32 0.0, %v492
        %v494 = vpop.f32.mrb[0].mxu0
        %495 = vmatprep.mubr.f32.mxu0 0.0
        %v496 = vand.u32 %v276, 4294901760
        %v497 = vsub.f32 %v276, %v496
        %v498 = vand.u32 %v497, 4294901760
        %v499 = vsub.f32 %v497, %v498
        %v500 = vand.u32 %v499, 4294901760
        %501 = vmatmul.mubr.f32.gmra.mrb[0].mxu0 %v500
        %v502 = vpop.f32.mrb[0].mxu0
        %v503 = vadd.f32 0.0, %v502
        %v504 = vpop.f32.mrb[0].mxu0
        %505 = vmatprep.mubr.f32.mxu0 0.0
        %v506 = vand.u32 %v277, 4294901760
        %v507 = vsub.f32 %v277, %v506
        %v508 = vand.u32 %v507, 4294901760
        %v509 = vsub.f32 %v507, %v508
        %v510 = vand.u32 %v509, 4294901760
        %511 = vmatmul.mubr.f32.gmra.mrb[0].mxu0 %v510
        %v512 = vpop.f32.mrb[0].mxu0
        %v513 = vadd.f32 0.0, %v512
        %v514 = vpop.f32.mrb[0].mxu0
        %515 = vmatprep.mubr.f32.mxu0 0.0
        %v516 = vand.u32 %v278, 4294901760
        %v517 = vsub.f32 %v278, %v516
        %v518 = vand.u32 %v517, 4294901760
        %v519 = vsub.f32 %v517, %v518
        %v520 = vand.u32 %v519, 4294901760
        %521 = vmatmul.mubr.f32.gmra.mrb[0].mxu0 %v520
        %v522 = vpop.f32.mrb[0].mxu0
        %v523 = vadd.f32 0.0, %v522
        %v524 = vpop.f32.mrb[0].mxu0
        %525 = vmatprep.mubr.f32.mxu0 0.0
        %v526 = vand.u32 %v279, 4294901760
        %v527 = vsub.f32 %v279, %v526
        %v528 = vand.u32 %v527, 4294901760
        %v529 = vsub.f32 %v527, %v528
        %v530 = vand.u32 %v529, 4294901760
        %531 = vmatmul.mubr.f32.gmra.mrb[0].mxu0 %v530
        %v532 = vpop.f32.mrb[0].mxu0
        %v533 = vadd.f32 0.0, %v532
        %v534 = vpop.f32.mrb[0].mxu0
        %535 = vmatprep.mubr.f32.mxu0 0.0
        %v536 = vand.u32 %v280, 4294901760
        %v537 = vsub.f32 %v280, %v536
        %v538 = vand.u32 %v537, 4294901760
        %v539 = vsub.f32 %v537, %v538
        %v540 = vand.u32 %v539, 4294901760
        %541 = vmatmul.mubr.f32.gmra.mrb[0].mxu0 %v540
        %v542 = vpop.f32.mrb[0].mxu0
        %v543 = vadd.f32 0.0, %v542
        %v544 = vpop.f32.mrb[0].mxu0
        %545 = vmatprep.mubr.f32.mxu0 0.0
        %v546 = vand.u32 %v281, 4294901760
        %v547 = vsub.f32 %v281, %v546
        %v548 = vand.u32 %v547, 4294901760
        %v549 = vsub.f32 %v547, %v548
        %v550 = vand.u32 %v549, 4294901760
        %551 = vmatmul.mubr.f32.gmra.mrb[0].mxu0 %v550
        %v552 = vpop.f32.mrb[0].mxu0
        %v553 = vadd.f32 0.0, %v552
        %v554 = vpop.f32.mrb[0].mxu0
        %555 = vmatprep.mubr.f32.mxu0 0.0
        %v556 = vand.u32 %v282, 4294901760
        %v557 = vsub.f32 %v282, %v556
        %v558 = vand.u32 %v557, 4294901760
        %v559 = vsub.f32 %v557, %v558
        %v560 = vand.u32 %v559, 4294901760
        %561 = vmatmul.mubr.f32.gmra.mrb[0].mxu0 %v560
        %v562 = vpop.f32.mrb[0].mxu0
        %v563 = vadd.f32 0.0, %v562
        %v564 = vpop.f32.mrb[0].mxu0
        %565 = vmatprep.mubr.f32.mxu0 0.0
        %v566 = vand.u32 %v283, 4294901760
        %v567 = vsub.f32 %v283, %v566
        %v568 = vand.u32 %v567, 4294901760
        %v569 = vsub.f32 %v567, %v568
        %v570 = vand.u32 %v569, 4294901760
        %571 = vmatmul.mubr.f32.gmra.mrb[0].mxu0 %v570
        %v572 = vpop.f32.mrb[0].mxu0
        %v573 = vadd.f32 0.0, %v572
        %v574 = vpop.f32.mrb[0].mxu0
        %575 = vmatprep.mubr.f32.mxu0 0.0
        %v576 = vand.u32 %v284, 4294901760
        %v577 = vsub.f32 %v284, %v576
        %v578 = vand.u32 %v577, 4294901760
        %v579 = vsub.f32 %v577, %v578
        %v580 = vand.u32 %v579, 4294901760
        %581 = vmatmul.mubr.f32.gmra.mrb[0].mxu0 %v580
        %v582 = vpop.f32.mrb[0].mxu0
        %v583 = vadd.f32 0.0, %v582
        %v584 = vpop.f32.mrb[0].mxu0
        %585 = vmatprep.mubr.f32.mxu0 0.0
        %v586 = vand.u32 %v285, 4294901760
        %v587 = vsub.f32 %v285, %v586
        %v588 = vand.u32 %v587, 4294901760
        %v589 = vsub.f32 %v587, %v588
        %v590 = vand.u32 %v589, 4294901760
        %591 = vmatmul.mubr.f32.gmra.mrb[0].mxu0 %v590
        %v592 = vpop.f32.mrb[0].mxu0
        %v593 = vadd.f32 0.0, %v592
        %v594 = vpop.f32.mrb[0].mxu0
        %595 = vmatprep.mubr.f32.mxu0 0.0
        %v596 = vand.u32 %v286, 4294901760
        %v597 = vsub.f32 %v286, %v596
        %v598 = vand.u32 %v597, 4294901760
        %v599 = vsub.f32 %v597, %v598
        %v600 = vand.u32 %v599, 4294901760
        %601 = vmatmul.mubr.f32.gmra.mrb[0].mxu0 %v600
        %v602 = vpop.f32.mrb[0].mxu0
        %v603 = vadd.f32 0.0, %v602
        %v604 = vpop.f32.mrb[0].mxu0
        %605 = vmatprep.mubr.f32.mxu0 0.0
        %v606 = vand.u32 %v287, 4294901760
        %v607 = vsub.f32 %v287, %v606
        %v608 = vand.u32 %v607, 4294901760
        %v609 = vsub.f32 %v607, %v608
        %v610 = vand.u32 %v609, 4294901760
        %611 = vmatmul.mubr.f32.gmra.mrb[0].mxu0 %v610
        %v612 = vpop.f32.mrb[0].mxu0
        %v613 = vadd.f32 0.0, %v612
        %v614 = vpop.f32.mrb[0].mxu0
        %615 = vmatprep.mubr.f32.mxu0 0.0
        %v616 = vand.u32 %v288, 4294901760
        %v617 = vsub.f32 %v288, %v616
        %v618 = vand.u32 %v617, 4294901760
        %v619 = vsub.f32 %v617, %v618
        %v620 = vand.u32 %v619, 4294901760
        %621 = vmatmul.mubr.f32.gmra.mrb[0].mxu0 %v620
        %v622 = vpop.f32.mrb[0].mxu0
        %v623 = vadd.f32 0.0, %v622
        %v624 = vpop.f32.mrb[0].mxu0
        %625 = vdwg.mxu0
        %626 = vmatprep.subr.mxu0 0.0
        %v627 = vand.u32 %v289, 4294901760
        %v628 = vsub.f32 %v289, %v627
        %v629 = vand.u32 %v628, 4294901760
        %v630 = vsub.f32 %v628, %v629
        %v631 = vand.u32 %v630, 4294901760
        %632 = vmatpush1.msra.mxu0 %v631
        %633 = vmatprep.subr.mxu0 0.0
        %v634 = vand.u32 %v290, 4294901760
        %v635 = vsub.f32 %v290, %v634
        %v636 = vand.u32 %v635, 4294901760
        %v637 = vsub.f32 %v635, %v636
        %v638 = vand.u32 %v637, 4294901760
        %639 = vmatpush1.msra.mxu0 %v638
        %640 = vmatprep.subr.mxu0 0.0
        %v641 = vand.u32 %v291, 4294901760
        %v642 = vsub.f32 %v291, %v641
        %v643 = vand.u32 %v642, 4294901760
        %v644 = vsub.f32 %v642, %v643
        %v645 = vand.u32 %v644, 4294901760
        %646 = vmatpush1.msra.mxu0 %v645
        %647 = vmatprep.subr.mxu0 0.0
        %v648 = vand.u32 %v292, 4294901760
        %v649 = vsub.f32 %v292, %v648
        %v650 = vand.u32 %v649, 4294901760
        %v651 = vsub.f32 %v649, %v650
        %v652 = vand.u32 %v651, 4294901760
        %653 = vmatpush1.msra.mxu0 %v652
        %654 = vmatprep.subr.mxu0 0.0
        %v655 = vand.u32 %v293, 4294901760
        %v656 = vsub.f32 %v293, %v655
        %v657 = vand.u32 %v656, 4294901760
        %v658 = vsub.f32 %v656, %v657
        %v659 = vand.u32 %v658, 4294901760
        %660 = vmatpush1.msra.mxu0 %v659
        %661 = vmatprep.subr.mxu0 0.0
        %v662 = vand.u32 %v294, 4294901760
        %v663 = vsub.f32 %v294, %v662
        %v664 = vand.u32 %v663, 4294901760
        %v665 = vsub.f32 %v663, %v664
        %v666 = vand.u32 %v665, 4294901760
        %667 = vmatpush1.msra.mxu0 %v666
        %668 = vmatprep.subr.mxu0 0.0
        %v669 = vand.u32 %v295, 4294901760
        %v670 = vsub.f32 %v295, %v669
        %v671 = vand.u32 %v670, 4294901760
        %v672 = vsub.f32 %v670, %v671
        %v673 = vand.u32 %v672, 4294901760
        %674 = vmatpush1.msra.mxu0 %v673
        %675 = vmatprep.subr.mxu0 0.0
        %v676 = vand.u32 %v296, 4294901760
        %v677 = vsub.f32 %v296, %v676
        %v678 = vand.u32 %v677, 4294901760
        %v679 = vsub.f32 %v677, %v678
        %v680 = vand.u32 %v679, 4294901760
        %681 = vmatpush1.msra.mxu0 %v680
        %682 = vmatprep.subr.mxu0 0.0
        %v683 = vand.u32 %v297, 4294901760
        %v684 = vsub.f32 %v297, %v683
        %v685 = vand.u32 %v684, 4294901760
        %v686 = vsub.f32 %v684, %v685
        %v687 = vand.u32 %v686, 4294901760
        %688 = vmatpush1.msra.mxu0 %v687
        %689 = vmatprep.subr.mxu0 0.0
        %v690 = vand.u32 %v298, 4294901760
        %v691 = vsub.f32 %v298, %v690
        %v692 = vand.u32 %v691, 4294901760
        %v693 = vsub.f32 %v691, %v692
        %v694 = vand.u32 %v693, 4294901760
        %695 = vmatpush1.msra.mxu0 %v694
        %696 = vmatprep.subr.mxu0 0.0
        %v697 = vand.u32 %v299, 4294901760
        %v698 = vsub.f32 %v299, %v697
        %v699 = vand.u32 %v698, 4294901760
        %v700 = vsub.f32 %v698, %v699
        %v701 = vand.u32 %v700, 4294901760
        %702 = vmatpush1.msra.mxu0 %v701
        %703 = vmatprep.subr.mxu0 0.0
        %v704 = vand.u32 %v300, 4294901760
        %v705 = vsub.f32 %v300, %v704
        %v706 = vand.u32 %v705, 4294901760
        %v707 = vsub.f32 %v705, %v706
        %v708 = vand.u32 %v707, 4294901760
        %709 = vmatpush1.msra.mxu0 %v708
        %710 = vmatprep.subr.mxu0 0.0
        %v711 = vand.u32 %v301, 4294901760
        %v712 = vsub.f32 %v301, %v711
        %v713 = vand.u32 %v712, 4294901760
        %v714 = vsub.f32 %v712, %v713
        %v715 = vand.u32 %v714, 4294901760
        %716 = vmatpush1.msra.mxu0 %v715
        %717 = vmatprep.subr.mxu0 0.0
        %v718 = vand.u32 %v302, 4294901760
        %v719 = vsub.f32 %v302, %v718
        %v720 = vand.u32 %v719, 4294901760
        %v721 = vsub.f32 %v719, %v720
        %v722 = vand.u32 %v721, 4294901760
        %723 = vmatpush1.msra.mxu0 %v722
        %724 = vmatprep.subr.mxu0 0.0
        %v725 = vand.u32 %v303, 4294901760
        %v726 = vsub.f32 %v303, %v725
        %v727 = vand.u32 %v726, 4294901760
        %v728 = vsub.f32 %v726, %v727
        %v729 = vand.u32 %v728, 4294901760
        %730 = vmatpush1.msra.mxu0 %v729
        %731 = vmatprep.subr.mxu0 0.0
        %v732 = vand.u32 %v304, 4294901760
        %v733 = vsub.f32 %v304, %v732
        %v734 = vand.u32 %v733, 4294901760
        %v735 = vsub.f32 %v733, %v734
        %v736 = vand.u32 %v735, 4294901760
        %737 = vmatpush1.msra.mxu0 %v736
        %738 = vmatprep.subr.mxu0 0.0
        %739 = vmatpush1.msra.mxu0 0.0
        %740 = vmatprep.subr.mxu0 0.0
        %741 = vmatpush1.msra.mxu0 0.0
        %742 = vmatprep.subr.mxu0 0.0
        %743 = vmatpush1.msra.mxu0 0.0
        %744 = vmatprep.subr.mxu0 0.0
        %745 = vmatpush1.msra.mxu0 0.0
        %746 = vmatprep.subr.mxu0 0.0
        %747 = vmatpush1.msra.mxu0 0.0
        %748 = vmatprep.subr.mxu0 0.0
        %749 = vmatpush1.msra.mxu0 0.0
        %750 = vmatprep.subr.mxu0 0.0
        %751 = vmatpush1.msra.mxu0 0.0
        %752 = vmatprep.subr.mxu0 0.0
        %753 = vmatpush1.msra.mxu0 0.0
        %754 = vmatprep.subr.mxu0 0.0
        %755 = vmatpush1.msra.mxu0 0.0
        %756 = vmatprep.subr.mxu0 0.0
        %757 = vmatpush1.msra.mxu0 0.0
        %758 = vmatprep.subr.mxu0 0.0
        %759 = vmatpush1.msra.mxu0 0.0
        %760 = vmatprep.subr.mxu0 0.0
        %761 = vmatpush1.msra.mxu0 0.0
        %762 = vmatprep.subr.mxu0 0.0
        %763 = vmatpush1.msra.mxu0 0.0
        %764 = vmatprep.subr.mxu0 0.0
        %765 = vmatpush1.msra.mxu0 0.0
        %766 = vmatprep.subr.mxu0 0.0
        %767 = vmatpush1.msra.mxu0 0.0
        %768 = vmatprep.subr.mxu0 0.0
        %769 = vmatpush1.msra.mxu0 0.0
        %770 = vmatprep.mubr.f32.mxu0 0.0
        %v771 = vand.u32 %v265, 4294901760
        %772 = vmatmul.mubr.f32.gmra.mrb[0].mxu0 %v771
        %v773 = vpop.f32.mrb[0].mxu0
        %v774 = vadd.f32 %v393, %v773
        %v775 = vpop.f32.mrb[0].mxu0
        %776 = vmatprep.mubr.f32.mxu0 0.0
        %v777 = vand.u32 %v266, 4294901760
        %778 = vmatmul.mubr.f32.gmra.mrb[0].mxu0 %v777
        %v779 = vpop.f32.mrb[0].mxu0
        %v780 = vadd.f32 %v403, %v779
        %v781 = vpop.f32.mrb[0].mxu0
        %782 = vmatprep.mubr.f32.mxu0 0.0
        %v783 = vand.u32 %v267, 4294901760
        %784 = vmatmul.mubr.f32.gmra.mrb[0].mxu0 %v783
        %v785 = vpop.f32.mrb[0].mxu0
        %v786 = vadd.f32 %v413, %v785
        %v787 = vpop.f32.mrb[0].mxu0
        %788 = vmatprep.mubr.f32.mxu0 0.0
        %v789 = vand.u32 %v268, 4294901760
        %790 = vmatmul.mubr.f32.gmra.mrb[0].mxu0 %v789
        %v791 = vpop.f32.mrb[0].mxu0
        %v792 = vadd.f32 %v423, %v791
        %v793 = vpop.f32.mrb[0].mxu0
        %794 = vmatprep.mubr.f32.mxu0 0.0
        %v795 = vand.u32 %v269, 4294901760
        %796 = vmatmul.mubr.f32.gmra.mrb[0].mxu0 %v795
        %v797 = vpop.f32.mrb[0].mxu0
        %v798 = vadd.f32 %v433, %v797
        %v799 = vpop.f32.mrb[0].mxu0
        %800 = vmatprep.mubr.f32.mxu0 0.0
        %v801 = vand.u32 %v270, 4294901760
        %802 = vmatmul.mubr.f32.gmra.mrb[0].mxu0 %v801
        %v803 = vpop.f32.mrb[0].mxu0
        %v804 = vadd.f32 %v443, %v803
        %v805 = vpop.f32.mrb[0].mxu0
        %806 = vmatprep.mubr.f32.mxu0 0.0
        %v807 = vand.u32 %v271, 4294901760
        %808 = vmatmul.mubr.f32.gmra.mrb[0].mxu0 %v807
        %v809 = vpop.f32.mrb[0].mxu0
        %v810 = vadd.f32 %v453, %v809
        %v811 = vpop.f32.mrb[0].mxu0
        %812 = vmatprep.mubr.f32.mxu0 0.0
        %v813 = vand.u32 %v272, 4294901760
        %814 = vmatmul.mubr.f32.gmra.mrb[0].mxu0 %v813
        %v815 = vpop.f32.mrb[0].mxu0
        %v816 = vadd.f32 %v463, %v815
        %v817 = vpop.f32.mrb[0].mxu0
        %818 = vmatprep.mubr.f32.mxu0 0.0
        %v819 = vand.u32 %v273, 4294901760
        %820 = vmatmul.mubr.f32.gmra.mrb[0].mxu0 %v819
        %v821 = vpop.f32.mrb[0].mxu0
        %v822 = vadd.f32 %v473, %v821
        %v823 = vpop.f32.mrb[0].mxu0
        %824 = vmatprep.mubr.f32.mxu0 0.0
        %v825 = vand.u32 %v274, 4294901760
        %826 = vmatmul.mubr.f32.gmra.mrb[0].mxu0 %v825
        %v827 = vpop.f32.mrb[0].mxu0
        %v828 = vadd.f32 %v483, %v827
        %v829 = vpop.f32.mrb[0].mxu0
        %830 = vmatprep.mubr.f32.mxu0 0.0
        %v831 = vand.u32 %v275, 4294901760
        %832 = vmatmul.mubr.f32.gmra.mrb[0].mxu0 %v831
        %v833 = vpop.f32.mrb[0].mxu0
        %v834 = vadd.f32 %v493, %v833
        %v835 = vpop.f32.mrb[0].mxu0
        %836 = vmatprep.mubr.f32.mxu0 0.0
        %v837 = vand.u32 %v276, 4294901760
        %838 = vmatmul.mubr.f32.gmra.mrb[0].mxu0 %v837
        %v839 = vpop.f32.mrb[0].mxu0
        %v840 = vadd.f32 %v503, %v839
        %v841 = vpop.f32.mrb[0].mxu0
        %842 = vmatprep.mubr.f32.mxu0 0.0
        %v843 = vand.u32 %v277, 4294901760
        %844 = vmatmul.mubr.f32.gmra.mrb[0].mxu0 %v843
        %v845 = vpop.f32.mrb[0].mxu0
        %v846 = vadd.f32 %v513, %v845
        %v847 = vpop.f32.mrb[0].mxu0
        %848 = vmatprep.mubr.f32.mxu0 0.0
        %v849 = vand.u32 %v278, 4294901760
        %850 = vmatmul.mubr.f32.gmra.mrb[0].mxu0 %v849
        %v851 = vpop.f32.mrb[0].mxu0
        %v852 = vadd.f32 %v523, %v851
        %v853 = vpop.f32.mrb[0].mxu0
        %854 = vmatprep.mubr.f32.mxu0 0.0
        %v855 = vand.u32 %v279, 4294901760
        %856 = vmatmul.mubr.f32.gmra.mrb[0].mxu0 %v855
        %v857 = vpop.f32.mrb[0].mxu0
        %v858 = vadd.f32 %v533, %v857
        %v859 = vpop.f32.mrb[0].mxu0
        %860 = vmatprep.mubr.f32.mxu0 0.0
        %v861 = vand.u32 %v280, 4294901760
        %862 = vmatmul.mubr.f32.gmra.mrb[0].mxu0 %v861
        %v863 = vpop.f32.mrb[0].mxu0
        %v864 = vadd.f32 %v543, %v863
        %v865 = vpop.f32.mrb[0].mxu0
        %866 = vmatprep.mubr.f32.mxu0 0.0
        %v867 = vand.u32 %v281, 4294901760
        %868 = vmatmul.mubr.f32.gmra.mrb[0].mxu0 %v867
        %v869 = vpop.f32.mrb[0].mxu0
        %v870 = vadd.f32 %v553, %v869
        %v871 = vpop.f32.mrb[0].mxu0
        %872 = vmatprep.mubr.f32.mxu0 0.0
        %v873 = vand.u32 %v282, 4294901760
        %874 = vmatmul.mubr.f32.gmra.mrb[0].mxu0 %v873
        %v875 = vpop.f32.mrb[0].mxu0
        %v876 = vadd.f32 %v563, %v875
        %v877 = vpop.f32.mrb[0].mxu0
        %878 = vmatprep.mubr.f32.mxu0 0.0
        %v879 = vand.u32 %v283, 4294901760
        %880 = vmatmul.mubr.f32.gmra.mrb[0].mxu0 %v879
        %v881 = vpop.f32.mrb[0].mxu0
        %v882 = vadd.f32 %v573, %v881
        %v883 = vpop.f32.mrb[0].mxu0
        %884 = vmatprep.mubr.f32.mxu0 0.0
        %v885 = vand.u32 %v284, 4294901760
        %886 = vmatmul.mubr.f32.gmra.mrb[0].mxu0 %v885
        %v887 = vpop.f32.mrb[0].mxu0
        %v888 = vadd.f32 %v583, %v887
        %v889 = vpop.f32.mrb[0].mxu0
        %890 = vmatprep.mubr.f32.mxu0 0.0
        %v891 = vand.u32 %v285, 4294901760
        %892 = vmatmul.mubr.f32.gmra.mrb[0].mxu0 %v891
        %v893 = vpop.f32.mrb[0].mxu0
        %v894 = vadd.f32 %v593, %v893
        %v895 = vpop.f32.mrb[0].mxu0
        %896 = vmatprep.mubr.f32.mxu0 0.0
        %v897 = vand.u32 %v286, 4294901760
        %898 = vmatmul.mubr.f32.gmra.mrb[0].mxu0 %v897
        %v899 = vpop.f32.mrb[0].mxu0
        %v900 = vadd.f32 %v603, %v899
        %v901 = vpop.f32.mrb[0].mxu0
        %902 = vmatprep.mubr.f32.mxu0 0.0
        %v903 = vand.u32 %v287, 4294901760
        %904 = vmatmul.mubr.f32.gmra.mrb[0].mxu0 %v903
        %v905 = vpop.f32.mrb[0].mxu0
        %v906 = vadd.f32 %v613, %v905
        %v907 = vpop.f32.mrb[0].mxu0
        %908 = vmatprep.mubr.f32.mxu0 0.0
        %v909 = vand.u32 %v288, 4294901760
        %910 = vmatmul.mubr.f32.gmra.mrb[0].mxu0 %v909
        %v911 = vpop.f32.mrb[0].mxu0
        %v912 = vadd.f32 %v623, %v911
        %v913 = vpop.f32.mrb[0].mxu0
        %914 = vdwg.mxu0
        %915 = vmatprep.subr.mxu0 0.0
        %v916 = vand.u32 %v289, 4294901760
        %v917 = vsub.f32 %v289, %v916
        %918 = vmatpush1.msra.mxu0 %v917
        %919 = vmatprep.subr.mxu0 0.0
        %v920 = vand.u32 %v290, 4294901760
        %v921 = vsub.f32 %v290, %v920
        %922 = vmatpush1.msra.mxu0 %v921
        %923 = vmatprep.subr.mxu0 0.0
        %v924 = vand.u32 %v291, 4294901760
        %v925 = vsub.f32 %v291, %v924
        %926 = vmatpush1.msra.mxu0 %v925
        %927 = vmatprep.subr.mxu0 0.0
        %v928 = vand.u32 %v292, 4294901760
        %v929 = vsub.f32 %v292, %v928
        %930 = vmatpush1.msra.mxu0 %v929
        %931 = vmatprep.subr.mxu0 0.0
        %v932 = vand.u32 %v293, 4294901760
        %v933 = vsub.f32 %v293, %v932
        %934 = vmatpush1.msra.mxu0 %v933
        %935 = vmatprep.subr.mxu0 0.0
        %v936 = vand.u32 %v294, 4294901760
        %v937 = vsub.f32 %v294, %v936
        %938 = vmatpush1.msra.mxu0 %v937
        %939 = vmatprep.subr.mxu0 0.0
        %v940 = vand.u32 %v295, 4294901760
        %v941 = vsub.f32 %v295, %v940
        %942 = vmatpush1.msra.mxu0 %v941
        %943 = vmatprep.subr.mxu0 0.0
        %v944 = vand.u32 %v296, 4294901760
        %v945 = vsub.f32 %v296, %v944
        %946 = vmatpush1.msra.mxu0 %v945
        %947 = vmatprep.subr.mxu0 0.0
        %v948 = vand.u32 %v297, 4294901760
        %v949 = vsub.f32 %v297, %v948
        %950 = vmatpush1.msra.mxu0 %v949
        %951 = vmatprep.subr.mxu0 0.0
        %v952 = vand.u32 %v298, 4294901760
        %v953 = vsub.f32 %v298, %v952
        %954 = vmatpush1.msra.mxu0 %v953
        %955 = vmatprep.subr.mxu0 0.0
        %v956 = vand.u32 %v299, 4294901760
        %v957 = vsub.f32 %v299, %v956
        %958 = vmatpush1.msra.mxu0 %v957
        %959 = vmatprep.subr.mxu0 0.0
        %v960 = vand.u32 %v300, 4294901760
        %v961 = vsub.f32 %v300, %v960
        %962 = vmatpush1.msra.mxu0 %v961
        %963 = vmatprep.subr.mxu0 0.0
        %v964 = vand.u32 %v301, 4294901760
        %v965 = vsub.f32 %v301, %v964
        %966 = vmatpush1.msra.mxu0 %v965
        %967 = vmatprep.subr.mxu0 0.0
        %v968 = vand.u32 %v302, 4294901760
        %v969 = vsub.f32 %v302, %v968
        %970 = vmatpush1.msra.mxu0 %v969
        %971 = vmatprep.subr.mxu0 0.0
        %v972 = vand.u32 %v303, 4294901760
        %v973 = vsub.f32 %v303, %v972
        %974 = vmatpush1.msra.mxu0 %v973
        %975 = vmatprep.subr.mxu0 0.0
        %v976 = vand.u32 %v304, 4294901760
        %v977 = vsub.f32 %v304, %v976
        %978 = vmatpush1.msra.mxu0 %v977
        %979 = vmatprep.subr.mxu0 0.0
        %980 = vmatpush1.msra.mxu0 0.0
        %981 = vmatprep.subr.mxu0 0.0
        %982 = vmatpush1.msra.mxu0 0.0
        %983 = vmatprep.subr.mxu0 0.0
        %984 = vmatpush1.msra.mxu0 0.0
        %985 = vmatprep.subr.mxu0 0.0
        %986 = vmatpush1.msra.mxu0 0.0
        %987 = vmatprep.subr.mxu0 0.0
        %988 = vmatpush1.msra.mxu0 0.0
        %989 = vmatprep.subr.mxu0 0.0
        %990 = vmatpush1.msra.mxu0 0.0
        %991 = vmatprep.subr.mxu0 0.0
        %992 = vmatpush1.msra.mxu0 0.0
        %993 = vmatprep.subr.mxu0 0.0
        %994 = vmatpush1.msra.mxu0 0.0
        %995 = vmatprep.subr.mxu0 0.0
        %996 = vmatpush1.msra.mxu0 0.0
        %997 = vmatprep.subr.mxu0 0.0
        %998 = vmatpush1.msra.mxu0 0.0
        %999 = vmatprep.subr.mxu0 0.0
        %1000 = vmatpush1.msra.mxu0 0.0
        %1001 = vmatprep.subr.mxu0 0.0
        %1002 = vmatpush1.msra.mxu0 0.0
        %1003 = vmatprep.subr.mxu0 0.0
        %1004 = vmatpush1.msra.mxu0 0.0
        %1005 = vmatprep.subr.mxu0 0.0
        %1006 = vmatpush1.msra.mxu0 0.0
        %1007 = vmatprep.subr.mxu0 0.0
        %1008 = vmatpush1.msra.mxu0 0.0
        %1009 = vmatprep.subr.mxu0 0.0
        %1010 = vmatpush1.msra.mxu0 0.0
        %1011 = vmatprep.mubr.f32.mxu0 0.0
        %v1012 = vand.u32 %v265, 4294901760
        %v1013 = vsub.f32 %v265, %v1012
        %1014 = vmatmul.mubr.f32.gmra.mrb[0].mxu0 %v1013
        %v1015 = vpop.f32.mrb[0].mxu0
        %v1016 = vadd.f32 %v774, %v1015
        %v1017 = vpop.f32.mrb[0].mxu0
        %1018 = vmatprep.mubr.f32.mxu0 0.0
        %v1019 = vand.u32 %v266, 4294901760
        %v1020 = vsub.f32 %v266, %v1019
        %1021 = vmatmul.mubr.f32.gmra.mrb[0].mxu0 %v1020
        %v1022 = vpop.f32.mrb[0].mxu0
        %v1023 = vadd.f32 %v780, %v1022
        %v1024 = vpop.f32.mrb[0].mxu0
        %1025 = vmatprep.mubr.f32.mxu0 0.0
        %v1026 = vand.u32 %v267, 4294901760
        %v1027 = vsub.f32 %v267, %v1026
        %1028 = vmatmul.mubr.f32.gmra.mrb[0].mxu0 %v1027
        %v1029 = vpop.f32.mrb[0].mxu0
        %v1030 = vadd.f32 %v786, %v1029
        %v1031 = vpop.f32.mrb[0].mxu0
        %1032 = vmatprep.mubr.f32.mxu0 0.0
        %v1033 = vand.u32 %v268, 4294901760
        %v1034 = vsub.f32 %v268, %v1033
        %1035 = vmatmul.mubr.f32.gmra.mrb[0].mxu0 %v1034
        %v1036 = vpop.f32.mrb[0].mxu0
        %v1037 = vadd.f32 %v792, %v1036
        %v1038 = vpop.f32.mrb[0].mxu0
        %1039 = vmatprep.mubr.f32.mxu0 0.0
        %v1040 = vand.u32 %v269, 4294901760
        %v1041 = vsub.f32 %v269, %v1040
        %1042 = vmatmul.mubr.f32.gmra.mrb[0].mxu0 %v1041
        %v1043 = vpop.f32.mrb[0].mxu0
        %v1044 = vadd.f32 %v798, %v1043
        %v1045 = vpop.f32.mrb[0].mxu0
        %1046 = vmatprep.mubr.f32.mxu0 0.0
        %v1047 = vand.u32 %v270, 4294901760
        %v1048 = vsub.f32 %v270, %v1047
        %1049 = vmatmul.mubr.f32.gmra.mrb[0].mxu0 %v1048
        %v1050 = vpop.f32.mrb[0].mxu0
        %v1051 = vadd.f32 %v804, %v1050
        %v1052 = vpop.f32.mrb[0].mxu0
        %1053 = vmatprep.mubr.f32.mxu0 0.0
        %v1054 = vand.u32 %v271, 4294901760
        %v1055 = vsub.f32 %v271, %v1054
        %1056 = vmatmul.mubr.f32.gmra.mrb[0].mxu0 %v1055
        %v1057 = vpop.f32.mrb[0].mxu0
        %v1058 = vadd.f32 %v810, %v1057
        %v1059 = vpop.f32.mrb[0].mxu0
        %1060 = vmatprep.mubr.f32.mxu0 0.0
        %v1061 = vand.u32 %v272, 4294901760
        %v1062 = vsub.f32 %v272, %v1061
        %1063 = vmatmul.mubr.f32.gmra.mrb[0].mxu0 %v1062
        %v1064 = vpop.f32.mrb[0].mxu0
        %v1065 = vadd.f32 %v816, %v1064
        %v1066 = vpop.f32.mrb[0].mxu0
        %1067 = vmatprep.mubr.f32.mxu0 0.0
        %v1068 = vand.u32 %v273, 4294901760
        %v1069 = vsub.f32 %v273, %v1068
        %1070 = vmatmul.mubr.f32.gmra.mrb[0].mxu0 %v1069
        %v1071 = vpop.f32.mrb[0].mxu0
        %v1072 = vadd.f32 %v822, %v1071
        %v1073 = vpop.f32.mrb[0].mxu0
        %1074 = vmatprep.mubr.f32.mxu0 0.0
        %v1075 = vand.u32 %v274, 4294901760
        %v1076 = vsub.f32 %v274, %v1075
        %1077 = vmatmul.mubr.f32.gmra.mrb[0].mxu0 %v1076
        %v1078 = vpop.f32.mrb[0].mxu0
        %v1079 = vadd.f32 %v828, %v1078
        %v1080 = vpop.f32.mrb[0].mxu0
        %1081 = vmatprep.mubr.f32.mxu0 0.0
        %v1082 = vand.u32 %v275, 4294901760
        %v1083 = vsub.f32 %v275, %v1082
        %1084 = vmatmul.mubr.f32.gmra.mrb[0].mxu0 %v1083
        %v1085 = vpop.f32.mrb[0].mxu0
        %v1086 = vadd.f32 %v834, %v1085
        %v1087 = vpop.f32.mrb[0].mxu0
        %1088 = vmatprep.mubr.f32.mxu0 0.0
        %v1089 = vand.u32 %v276, 4294901760
        %v1090 = vsub.f32 %v276, %v1089
        %1091 = vmatmul.mubr.f32.gmra.mrb[0].mxu0 %v1090
        %v1092 = vpop.f32.mrb[0].mxu0
        %v1093 = vadd.f32 %v840, %v1092
        %v1094 = vpop.f32.mrb[0].mxu0
        %1095 = vmatprep.mubr.f32.mxu0 0.0
        %v1096 = vand.u32 %v277, 4294901760
        %v1097 = vsub.f32 %v277, %v1096
        %1098 = vmatmul.mubr.f32.gmra.mrb[0].mxu0 %v1097
        %v1099 = vpop.f32.mrb[0].mxu0
        %v1100 = vadd.f32 %v846, %v1099
        %v1101 = vpop.f32.mrb[0].mxu0
        %1102 = vmatprep.mubr.f32.mxu0 0.0
        %v1103 = vand.u32 %v278, 4294901760
        %v1104 = vsub.f32 %v278, %v1103
        %1105 = vmatmul.mubr.f32.gmra.mrb[0].mxu0 %v1104
        %v1106 = vpop.f32.mrb[0].mxu0
        %v1107 = vadd.f32 %v852, %v1106
        %v1108 = vpop.f32.mrb[0].mxu0
        %1109 = vmatprep.mubr.f32.mxu0 0.0
        %v1110 = vand.u32 %v279, 4294901760
        %v1111 = vsub.f32 %v279, %v1110
        %1112 = vmatmul.mubr.f32.gmra.mrb[0].mxu0 %v1111
        %v1113 = vpop.f32.mrb[0].mxu0
        %v1114 = vadd.f32 %v858, %v1113
        %v1115 = vpop.f32.mrb[0].mxu0
        %1116 = vmatprep.mubr.f32.mxu0 0.0
        %v1117 = vand.u32 %v280, 4294901760
        %v1118 = vsub.f32 %v280, %v1117
        %1119 = vmatmul.mubr.f32.gmra.mrb[0].mxu0 %v1118
        %v1120 = vpop.f32.mrb[0].mxu0
        %v1121 = vadd.f32 %v864, %v1120
        %v1122 = vpop.f32.mrb[0].mxu0
        %1123 = vmatprep.mubr.f32.mxu0 0.0
        %v1124 = vand.u32 %v281, 4294901760
        %v1125 = vsub.f32 %v281, %v1124
        %1126 = vmatmul.mubr.f32.gmra.mrb[0].mxu0 %v1125
        %v1127 = vpop.f32.mrb[0].mxu0
        %v1128 = vadd.f32 %v870, %v1127
        %v1129 = vpop.f32.mrb[0].mxu0
        %1130 = vmatprep.mubr.f32.mxu0 0.0
        %v1131 = vand.u32 %v282, 4294901760
        %v1132 = vsub.f32 %v282, %v1131
        %1133 = vmatmul.mubr.f32.gmra.mrb[0].mxu0 %v1132
        %v1134 = vpop.f32.mrb[0].mxu0
        %v1135 = vadd.f32 %v876, %v1134
        %v1136 = vpop.f32.mrb[0].mxu0
        %1137 = vmatprep.mubr.f32.mxu0 0.0
        %v1138 = vand.u32 %v283, 4294901760
        %v1139 = vsub.f32 %v283, %v1138
        %1140 = vmatmul.mubr.f32.gmra.mrb[0].mxu0 %v1139
        %v1141 = vpop.f32.mrb[0].mxu0
        %v1142 = vadd.f32 %v882, %v1141
        %v1143 = vpop.f32.mrb[0].mxu0
        %1144 = vmatprep.mubr.f32.mxu0 0.0
        %v1145 = vand.u32 %v284, 4294901760
        %v1146 = vsub.f32 %v284, %v1145
        %1147 = vmatmul.mubr.f32.gmra.mrb[0].mxu0 %v1146
        %v1148 = vpop.f32.mrb[0].mxu0
        %v1149 = vadd.f32 %v888, %v1148
        %v1150 = vpop.f32.mrb[0].mxu0
        %1151 = vmatprep.mubr.f32.mxu0 0.0
        %v1152 = vand.u32 %v285, 4294901760
        %v1153 = vsub.f32 %v285, %v1152
        %1154 = vmatmul.mubr.f32.gmra.mrb[0].mxu0 %v1153
        %v1155 = vpop.f32.mrb[0].mxu0
        %v1156 = vadd.f32 %v894, %v1155
        %v1157 = vpop.f32.mrb[0].mxu0
        %1158 = vmatprep.mubr.f32.mxu0 0.0
        %v1159 = vand.u32 %v286, 4294901760
        %v1160 = vsub.f32 %v286, %v1159
        %1161 = vmatmul.mubr.f32.gmra.mrb[0].mxu0 %v1160
        %v1162 = vpop.f32.mrb[0].mxu0
        %v1163 = vadd.f32 %v900, %v1162
        %v1164 = vpop.f32.mrb[0].mxu0
        %1165 = vmatprep.mubr.f32.mxu0 0.0
        %v1166 = vand.u32 %v287, 4294901760
        %v1167 = vsub.f32 %v287, %v1166
        %1168 = vmatmul.mubr.f32.gmra.mrb[0].mxu0 %v1167
        %v1169 = vpop.f32.mrb[0].mxu0
        %v1170 = vadd.f32 %v906, %v1169
        %v1171 = vpop.f32.mrb[0].mxu0
        %1172 = vmatprep.mubr.f32.mxu0 0.0
        %v1173 = vand.u32 %v288, 4294901760
        %v1174 = vsub.f32 %v288, %v1173
        %1175 = vmatmul.mubr.f32.gmra.mrb[0].mxu0 %v1174
        %v1176 = vpop.f32.mrb[0].mxu0
        %v1177 = vadd.f32 %v912, %v1176
        %v1178 = vpop.f32.mrb[0].mxu0
        %1179 = vdwg.mxu0
        %1180 = vmatprep.subr.mxu0 0.0
        %v1181 = vand.u32 %v289, 4294901760
        %1182 = vmatpush1.msra.mxu0 %v1181
        %1183 = vmatprep.subr.mxu0 0.0
        %v1184 = vand.u32 %v290, 4294901760
        %1185 = vmatpush1.msra.mxu0 %v1184
        %1186 = vmatprep.subr.mxu0 0.0
        %v1187 = vand.u32 %v291, 4294901760
        %1188 = vmatpush1.msra.mxu0 %v1187
        %1189 = vmatprep.subr.mxu0 0.0
        %v1190 = vand.u32 %v292, 4294901760
        %1191 = vmatpush1.msra.mxu0 %v1190
        %1192 = vmatprep.subr.mxu0 0.0
        %v1193 = vand.u32 %v293, 4294901760
        %1194 = vmatpush1.msra.mxu0 %v1193
        %1195 = vmatprep.subr.mxu0 0.0
        %v1196 = vand.u32 %v294, 4294901760
        %1197 = vmatpush1.msra.mxu0 %v1196
        %1198 = vmatprep.subr.mxu0 0.0
        %v1199 = vand.u32 %v295, 4294901760
        %1200 = vmatpush1.msra.mxu0 %v1199
        %1201 = vmatprep.subr.mxu0 0.0
        %v1202 = vand.u32 %v296, 4294901760
        %1203 = vmatpush1.msra.mxu0 %v1202
        %1204 = vmatprep.subr.mxu0 0.0
        %v1205 = vand.u32 %v297, 4294901760
        %1206 = vmatpush1.msra.mxu0 %v1205
        %1207 = vmatprep.subr.mxu0 0.0
        %v1208 = vand.u32 %v298, 4294901760
        %1209 = vmatpush1.msra.mxu0 %v1208
        %1210 = vmatprep.subr.mxu0 0.0
        %v1211 = vand.u32 %v299, 4294901760
        %1212 = vmatpush1.msra.mxu0 %v1211
        %1213 = vmatprep.subr.mxu0 0.0
        %v1214 = vand.u32 %v300, 4294901760
        %1215 = vmatpush1.msra.mxu0 %v1214
        %1216 = vmatprep.subr.mxu0 0.0
        %v1217 = vand.u32 %v301, 4294901760
        %1218 = vmatpush1.msra.mxu0 %v1217
        %1219 = vmatprep.subr.mxu0 0.0
        %v1220 = vand.u32 %v302, 4294901760
        %1221 = vmatpush1.msra.mxu0 %v1220
        %1222 = vmatprep.subr.mxu0 0.0
        %v1223 = vand.u32 %v303, 4294901760
        %1224 = vmatpush1.msra.mxu0 %v1223
        %1225 = vmatprep.subr.mxu0 0.0
        %v1226 = vand.u32 %v304, 4294901760
        %1227 = vmatpush1.msra.mxu0 %v1226
        %1228 = vmatprep.subr.mxu0 0.0
        %1229 = vmatpush1.msra.mxu0 0.0
        %1230 = vmatprep.subr.mxu0 0.0
        %1231 = vmatpush1.msra.mxu0 0.0
        %1232 = vmatprep.subr.mxu0 0.0
        %1233 = vmatpush1.msra.mxu0 0.0
        %1234 = vmatprep.subr.mxu0 0.0
        %1235 = vmatpush1.msra.mxu0 0.0
        %1236 = vmatprep.subr.mxu0 0.0
        %1237 = vmatpush1.msra.mxu0 0.0
        %1238 = vmatprep.subr.mxu0 0.0
        %1239 = vmatpush1.msra.mxu0 0.0
        %1240 = vmatprep.subr.mxu0 0.0
        %1241 = vmatpush1.msra.mxu0 0.0
        %1242 = vmatprep.subr.mxu0 0.0
        %1243 = vmatpush1.msra.mxu0 0.0
        %1244 = vmatprep.subr.mxu0 0.0
        %1245 = vmatpush1.msra.mxu0 0.0
        %1246 = vmatprep.subr.mxu0 0.0
        %1247 = vmatpush1.msra.mxu0 0.0
        %1248 = vmatprep.subr.mxu0 0.0
        %1249 = vmatpush1.msra.mxu0 0.0
        %1250 = vmatprep.subr.mxu0 0.0
        %1251 = vmatpush1.msra.mxu0 0.0
        %1252 = vmatprep.subr.mxu0 0.0
        %1253 = vmatpush1.msra.mxu0 0.0
        %1254 = vmatprep.subr.mxu0 0.0
        %1255 = vmatpush1.msra.mxu0 0.0
        %1256 = vmatprep.subr.mxu0 0.0
        %1257 = vmatpush1.msra.mxu0 0.0
        %1258 = vmatprep.subr.mxu0 0.0
        %1259 = vmatpush1.msra.mxu0 0.0
        %1260 = vmatprep.mubr.f32.mxu0 0.0
        %v1261 = vand.u32 %v265, 4294901760
        %v1262 = vsub.f32 %v265, %v1261
        %v1263 = vand.u32 %v1262, 4294901760
        %1264 = vmatmul.mubr.f32.gmra.mrb[0].mxu0 %v1263
        %v1265 = vpop.f32.mrb[0].mxu0
        %v1266 = vadd.f32 %v1016, %v1265
        %v1267 = vpop.f32.mrb[0].mxu0
        %1268 = vmatprep.mubr.f32.mxu0 0.0
        %v1269 = vand.u32 %v266, 4294901760
        %v1270 = vsub.f32 %v266, %v1269
        %v1271 = vand.u32 %v1270, 4294901760
        %1272 = vmatmul.mubr.f32.gmra.mrb[0].mxu0 %v1271
        %v1273 = vpop.f32.mrb[0].mxu0
        %v1274 = vadd.f32 %v1023, %v1273
        %v1275 = vpop.f32.mrb[0].mxu0
        %1276 = vmatprep.mubr.f32.mxu0 0.0
        %v1277 = vand.u32 %v267, 4294901760
        %v1278 = vsub.f32 %v267, %v1277
        %v1279 = vand.u32 %v1278, 4294901760
        %1280 = vmatmul.mubr.f32.gmra.mrb[0].mxu0 %v1279
        %v1281 = vpop.f32.mrb[0].mxu0
        %v1282 = vadd.f32 %v1030, %v1281
        %v1283 = vpop.f32.mrb[0].mxu0
        %1284 = vmatprep.mubr.f32.mxu0 0.0
        %v1285 = vand.u32 %v268, 4294901760
        %v1286 = vsub.f32 %v268, %v1285
        %v1287 = vand.u32 %v1286, 4294901760
        %1288 = vmatmul.mubr.f32.gmra.mrb[0].mxu0 %v1287
        %v1289 = vpop.f32.mrb[0].mxu0
        %v1290 = vadd.f32 %v1037, %v1289
        %v1291 = vpop.f32.mrb[0].mxu0
        %1292 = vmatprep.mubr.f32.mxu0 0.0
        %v1293 = vand.u32 %v269, 4294901760
        %v1294 = vsub.f32 %v269, %v1293
        %v1295 = vand.u32 %v1294, 4294901760
        %1296 = vmatmul.mubr.f32.gmra.mrb[0].mxu0 %v1295
        %v1297 = vpop.f32.mrb[0].mxu0
        %v1298 = vadd.f32 %v1044, %v1297
        %v1299 = vpop.f32.mrb[0].mxu0
        %1300 = vmatprep.mubr.f32.mxu0 0.0
        %v1301 = vand.u32 %v270, 4294901760
        %v1302 = vsub.f32 %v270, %v1301
        %v1303 = vand.u32 %v1302, 4294901760
        %1304 = vmatmul.mubr.f32.gmra.mrb[0].mxu0 %v1303
        %v1305 = vpop.f32.mrb[0].mxu0
        %v1306 = vadd.f32 %v1051, %v1305
        %v1307 = vpop.f32.mrb[0].mxu0
        %1308 = vmatprep.mubr.f32.mxu0 0.0
        %v1309 = vand.u32 %v271, 4294901760
        %v1310 = vsub.f32 %v271, %v1309
        %v1311 = vand.u32 %v1310, 4294901760
        %1312 = vmatmul.mubr.f32.gmra.mrb[0].mxu0 %v1311
        %v1313 = vpop.f32.mrb[0].mxu0
        %v1314 = vadd.f32 %v1058, %v1313
        %v1315 = vpop.f32.mrb[0].mxu0
        %1316 = vmatprep.mubr.f32.mxu0 0.0
        %v1317 = vand.u32 %v272, 4294901760
        %v1318 = vsub.f32 %v272, %v1317
        %v1319 = vand.u32 %v1318, 4294901760
        %1320 = vmatmul.mubr.f32.gmra.mrb[0].mxu0 %v1319
        %v1321 = vpop.f32.mrb[0].mxu0
        %v1322 = vadd.f32 %v1065, %v1321
        %v1323 = vpop.f32.mrb[0].mxu0
        %1324 = vmatprep.mubr.f32.mxu0 0.0
        %v1325 = vand.u32 %v273, 4294901760
        %v1326 = vsub.f32 %v273, %v1325
        %v1327 = vand.u32 %v1326, 4294901760
        %1328 = vmatmul.mubr.f32.gmra.mrb[0].mxu0 %v1327
        %v1329 = vpop.f32.mrb[0].mxu0
        %v1330 = vadd.f32 %v1072, %v1329
        %v1331 = vpop.f32.mrb[0].mxu0
        %1332 = vmatprep.mubr.f32.mxu0 0.0
        %v1333 = vand.u32 %v274, 4294901760
        %v1334 = vsub.f32 %v274, %v1333
        %v1335 = vand.u32 %v1334, 4294901760
        %1336 = vmatmul.mubr.f32.gmra.mrb[0].mxu0 %v1335
        %v1337 = vpop.f32.mrb[0].mxu0
        %v1338 = vadd.f32 %v1079, %v1337
        %v1339 = vpop.f32.mrb[0].mxu0
        %1340 = vmatprep.mubr.f32.mxu0 0.0
        %v1341 = vand.u32 %v275, 4294901760
        %v1342 = vsub.f32 %v275, %v1341
        %v1343 = vand.u32 %v1342, 4294901760
        %1344 = vmatmul.mubr.f32.gmra.mrb[0].mxu0 %v1343
        %v1345 = vpop.f32.mrb[0].mxu0
        %v1346 = vadd.f32 %v1086, %v1345
        %v1347 = vpop.f32.mrb[0].mxu0
        %1348 = vmatprep.mubr.f32.mxu0 0.0
        %v1349 = vand.u32 %v276, 4294901760
        %v1350 = vsub.f32 %v276, %v1349
        %v1351 = vand.u32 %v1350, 4294901760
        %1352 = vmatmul.mubr.f32.gmra.mrb[0].mxu0 %v1351
        %v1353 = vpop.f32.mrb[0].mxu0
        %v1354 = vadd.f32 %v1093, %v1353
        %v1355 = vpop.f32.mrb[0].mxu0
        %1356 = vmatprep.mubr.f32.mxu0 0.0
        %v1357 = vand.u32 %v277, 4294901760
        %v1358 = vsub.f32 %v277, %v1357
        %v1359 = vand.u32 %v1358, 4294901760
        %1360 = vmatmul.mubr.f32.gmra.mrb[0].mxu0 %v1359
        %v1361 = vpop.f32.mrb[0].mxu0
        %v1362 = vadd.f32 %v1100, %v1361
        %v1363 = vpop.f32.mrb[0].mxu0
        %1364 = vmatprep.mubr.f32.mxu0 0.0
        %v1365 = vand.u32 %v278, 4294901760
        %v1366 = vsub.f32 %v278, %v1365
        %v1367 = vand.u32 %v1366, 4294901760
        %1368 = vmatmul.mubr.f32.gmra.mrb[0].mxu0 %v1367
        %v1369 = vpop.f32.mrb[0].mxu0
        %v1370 = vadd.f32 %v1107, %v1369
        %v1371 = vpop.f32.mrb[0].mxu0
        %1372 = vmatprep.mubr.f32.mxu0 0.0
        %v1373 = vand.u32 %v279, 4294901760
        %v1374 = vsub.f32 %v279, %v1373
        %v1375 = vand.u32 %v1374, 4294901760
        %1376 = vmatmul.mubr.f32.gmra.mrb[0].mxu0 %v1375
        %v1377 = vpop.f32.mrb[0].mxu0
        %v1378 = vadd.f32 %v1114, %v1377
        %v1379 = vpop.f32.mrb[0].mxu0
        %1380 = vmatprep.mubr.f32.mxu0 0.0
        %v1381 = vand.u32 %v280, 4294901760
        %v1382 = vsub.f32 %v280, %v1381
        %v1383 = vand.u32 %v1382, 4294901760
        %1384 = vmatmul.mubr.f32.gmra.mrb[0].mxu0 %v1383
        %v1385 = vpop.f32.mrb[0].mxu0
        %v1386 = vadd.f32 %v1121, %v1385
        %v1387 = vpop.f32.mrb[0].mxu0
        %1388 = vmatprep.mubr.f32.mxu0 0.0
        %v1389 = vand.u32 %v281, 4294901760
        %v1390 = vsub.f32 %v281, %v1389
        %v1391 = vand.u32 %v1390, 4294901760
        %1392 = vmatmul.mubr.f32.gmra.mrb[0].mxu0 %v1391
        %v1393 = vpop.f32.mrb[0].mxu0
        %v1394 = vadd.f32 %v1128, %v1393
        %v1395 = vpop.f32.mrb[0].mxu0
        %1396 = vmatprep.mubr.f32.mxu0 0.0
        %v1397 = vand.u32 %v282, 4294901760
        %v1398 = vsub.f32 %v282, %v1397
        %v1399 = vand.u32 %v1398, 4294901760
        %1400 = vmatmul.mubr.f32.gmra.mrb[0].mxu0 %v1399
        %v1401 = vpop.f32.mrb[0].mxu0
        %v1402 = vadd.f32 %v1135, %v1401
        %v1403 = vpop.f32.mrb[0].mxu0
        %1404 = vmatprep.mubr.f32.mxu0 0.0
        %v1405 = vand.u32 %v283, 4294901760
        %v1406 = vsub.f32 %v283, %v1405
        %v1407 = vand.u32 %v1406, 4294901760
        %1408 = vmatmul.mubr.f32.gmra.mrb[0].mxu0 %v1407
        %v1409 = vpop.f32.mrb[0].mxu0
        %v1410 = vadd.f32 %v1142, %v1409
        %v1411 = vpop.f32.mrb[0].mxu0
        %1412 = vmatprep.mubr.f32.mxu0 0.0
        %v1413 = vand.u32 %v284, 4294901760
        %v1414 = vsub.f32 %v284, %v1413
        %v1415 = vand.u32 %v1414, 4294901760
        %1416 = vmatmul.mubr.f32.gmra.mrb[0].mxu0 %v1415
        %v1417 = vpop.f32.mrb[0].mxu0
        %v1418 = vadd.f32 %v1149, %v1417
        %v1419 = vpop.f32.mrb[0].mxu0
        %1420 = vmatprep.mubr.f32.mxu0 0.0
        %v1421 = vand.u32 %v285, 4294901760
        %v1422 = vsub.f32 %v285, %v1421
        %v1423 = vand.u32 %v1422, 4294901760
        %1424 = vmatmul.mubr.f32.gmra.mrb[0].mxu0 %v1423
        %v1425 = vpop.f32.mrb[0].mxu0
        %v1426 = vadd.f32 %v1156, %v1425
        %v1427 = vpop.f32.mrb[0].mxu0
        %1428 = vmatprep.mubr.f32.mxu0 0.0
        %v1429 = vand.u32 %v286, 4294901760
        %v1430 = vsub.f32 %v286, %v1429
        %v1431 = vand.u32 %v1430, 4294901760
        %1432 = vmatmul.mubr.f32.gmra.mrb[0].mxu0 %v1431
        %v1433 = vpop.f32.mrb[0].mxu0
        %v1434 = vadd.f32 %v1163, %v1433
        %v1435 = vpop.f32.mrb[0].mxu0
        %1436 = vmatprep.mubr.f32.mxu0 0.0
        %v1437 = vand.u32 %v287, 4294901760
        %v1438 = vsub.f32 %v287, %v1437
        %v1439 = vand.u32 %v1438, 4294901760
        %1440 = vmatmul.mubr.f32.gmra.mrb[0].mxu0 %v1439
        %v1441 = vpop.f32.mrb[0].mxu0
        %v1442 = vadd.f32 %v1170, %v1441
        %v1443 = vpop.f32.mrb[0].mxu0
        %1444 = vmatprep.mubr.f32.mxu0 0.0
        %v1445 = vand.u32 %v288, 4294901760
        %v1446 = vsub.f32 %v288, %v1445
        %v1447 = vand.u32 %v1446, 4294901760
        %1448 = vmatmul.mubr.f32.gmra.mrb[0].mxu0 %v1447
        %v1449 = vpop.f32.mrb[0].mxu0
        %v1450 = vadd.f32 %v1177, %v1449
        %v1451 = vpop.f32.mrb[0].mxu0
        %1452 = vdwg.mxu0
        %1453 = vmatprep.subr.mxu0 0.0
        %v1454 = vand.u32 %v289, 4294901760
        %v1455 = vsub.f32 %v289, %v1454
        %v1456 = vand.u32 %v1455, 4294901760
        %1457 = vmatpush1.msra.mxu0 %v1456
        %1458 = vmatprep.subr.mxu0 0.0
        %v1459 = vand.u32 %v290, 4294901760
        %v1460 = vsub.f32 %v290, %v1459
        %v1461 = vand.u32 %v1460, 4294901760
        %1462 = vmatpush1.msra.mxu0 %v1461
        %1463 = vmatprep.subr.mxu0 0.0
        %v1464 = vand.u32 %v291, 4294901760
        %v1465 = vsub.f32 %v291, %v1464
        %v1466 = vand.u32 %v1465, 4294901760
        %1467 = vmatpush1.msra.mxu0 %v1466
        %1468 = vmatprep.subr.mxu0 0.0
        %v1469 = vand.u32 %v292, 4294901760
        %v1470 = vsub.f32 %v292, %v1469
        %v1471 = vand.u32 %v1470, 4294901760
        %1472 = vmatpush1.msra.mxu0 %v1471
        %1473 = vmatprep.subr.mxu0 0.0
        %v1474 = vand.u32 %v293, 4294901760
        %v1475 = vsub.f32 %v293, %v1474
        %v1476 = vand.u32 %v1475, 4294901760
        %1477 = vmatpush1.msra.mxu0 %v1476
        %1478 = vmatprep.subr.mxu0 0.0
        %v1479 = vand.u32 %v294, 4294901760
        %v1480 = vsub.f32 %v294, %v1479
        %v1481 = vand.u32 %v1480, 4294901760
        %1482 = vmatpush1.msra.mxu0 %v1481
        %1483 = vmatprep.subr.mxu0 0.0
        %v1484 = vand.u32 %v295, 4294901760
        %v1485 = vsub.f32 %v295, %v1484
        %v1486 = vand.u32 %v1485, 4294901760
        %1487 = vmatpush1.msra.mxu0 %v1486
        %1488 = vmatprep.subr.mxu0 0.0
        %v1489 = vand.u32 %v296, 4294901760
        %v1490 = vsub.f32 %v296, %v1489
        %v1491 = vand.u32 %v1490, 4294901760
        %1492 = vmatpush1.msra.mxu0 %v1491
        %1493 = vmatprep.subr.mxu0 0.0
        %v1494 = vand.u32 %v297, 4294901760
        %v1495 = vsub.f32 %v297, %v1494
        %v1496 = vand.u32 %v1495, 4294901760
        %1497 = vmatpush1.msra.mxu0 %v1496
        %1498 = vmatprep.subr.mxu0 0.0
        %v1499 = vand.u32 %v298, 4294901760
        %v1500 = vsub.f32 %v298, %v1499
        %v1501 = vand.u32 %v1500, 4294901760
        %1502 = vmatpush1.msra.mxu0 %v1501
        %1503 = vmatprep.subr.mxu0 0.0
        %v1504 = vand.u32 %v299, 4294901760
        %v1505 = vsub.f32 %v299, %v1504
        %v1506 = vand.u32 %v1505, 4294901760
        %1507 = vmatpush1.msra.mxu0 %v1506
        %1508 = vmatprep.subr.mxu0 0.0
        %v1509 = vand.u32 %v300, 4294901760
        %v1510 = vsub.f32 %v300, %v1509
        %v1511 = vand.u32 %v1510, 4294901760
        %1512 = vmatpush1.msra.mxu0 %v1511
        %1513 = vmatprep.subr.mxu0 0.0
        %v1514 = vand.u32 %v301, 4294901760
        %v1515 = vsub.f32 %v301, %v1514
        %v1516 = vand.u32 %v1515, 4294901760
        %1517 = vmatpush1.msra.mxu0 %v1516
        %1518 = vmatprep.subr.mxu0 0.0
        %v1519 = vand.u32 %v302, 4294901760
        %v1520 = vsub.f32 %v302, %v1519
        %v1521 = vand.u32 %v1520, 4294901760
        %1522 = vmatpush1.msra.mxu0 %v1521
        %1523 = vmatprep.subr.mxu0 0.0
        %v1524 = vand.u32 %v303, 4294901760
        %v1525 = vsub.f32 %v303, %v1524
        %v1526 = vand.u32 %v1525, 4294901760
        %1527 = vmatpush1.msra.mxu0 %v1526
        %1528 = vmatprep.subr.mxu0 0.0
        %v1529 = vand.u32 %v304, 4294901760
        %v1530 = vsub.f32 %v304, %v1529
        %v1531 = vand.u32 %v1530, 4294901760
        %1532 = vmatpush1.msra.mxu0 %v1531
        %1533 = vmatprep.subr.mxu0 0.0
        %1534 = vmatpush1.msra.mxu0 0.0
        %1535 = vmatprep.subr.mxu0 0.0
        %1536 = vmatpush1.msra.mxu0 0.0
        %1537 = vmatprep.subr.mxu0 0.0
        %1538 = vmatpush1.msra.mxu0 0.0
        %1539 = vmatprep.subr.mxu0 0.0
        %1540 = vmatpush1.msra.mxu0 0.0
        %1541 = vmatprep.subr.mxu0 0.0
        %1542 = vmatpush1.msra.mxu0 0.0
        %1543 = vmatprep.subr.mxu0 0.0
        %1544 = vmatpush1.msra.mxu0 0.0
        %1545 = vmatprep.subr.mxu0 0.0
        %1546 = vmatpush1.msra.mxu0 0.0
        %1547 = vmatprep.subr.mxu0 0.0
        %1548 = vmatpush1.msra.mxu0 0.0
        %1549 = vmatprep.subr.mxu0 0.0
        %1550 = vmatpush1.msra.mxu0 0.0
        %1551 = vmatprep.subr.mxu0 0.0
        %1552 = vmatpush1.msra.mxu0 0.0
        %1553 = vmatprep.subr.mxu0 0.0
        %1554 = vmatpush1.msra.mxu0 0.0
        %1555 = vmatprep.subr.mxu0 0.0
        %1556 = vmatpush1.msra.mxu0 0.0
        %1557 = vmatprep.subr.mxu0 0.0
        %1558 = vmatpush1.msra.mxu0 0.0
        %1559 = vmatprep.subr.mxu0 0.0
        %1560 = vmatpush1.msra.mxu0 0.0
        %1561 = vmatprep.subr.mxu0 0.0
        %1562 = vmatpush1.msra.mxu0 0.0
        %1563 = vmatprep.subr.mxu0 0.0
        %1564 = vmatpush1.msra.mxu0 0.0
        %1565 = vmatprep.mubr.f32.mxu0 0.0
        %v1566 = vand.u32 %v265, 4294901760
        %1567 = vmatmul.mubr.f32.gmra.mrb[0].mxu0 %v1566
        %v1568 = vpop.f32.mrb[0].mxu0
        %v1569 = vadd.f32 %v1266, %v1568
        %v1570 = vpop.f32.mrb[0].mxu0
        %1571 = vmatprep.mubr.f32.mxu0 0.0
        %v1572 = vand.u32 %v266, 4294901760
        %1573 = vmatmul.mubr.f32.gmra.mrb[0].mxu0 %v1572
        %v1574 = vpop.f32.mrb[0].mxu0
        %v1575 = vadd.f32 %v1274, %v1574
        %v1576 = vpop.f32.mrb[0].mxu0
        %1577 = vmatprep.mubr.f32.mxu0 0.0
        %v1578 = vand.u32 %v267, 4294901760
        %1579 = vmatmul.mubr.f32.gmra.mrb[0].mxu0 %v1578
        %v1580 = vpop.f32.mrb[0].mxu0
        %v1581 = vadd.f32 %v1282, %v1580
        %v1582 = vpop.f32.mrb[0].mxu0
        %1583 = vmatprep.mubr.f32.mxu0 0.0
        %v1584 = vand.u32 %v268, 4294901760
        %1585 = vmatmul.mubr.f32.gmra.mrb[0].mxu0 %v1584
        %v1586 = vpop.f32.mrb[0].mxu0
        %v1587 = vadd.f32 %v1290, %v1586
        %v1588 = vpop.f32.mrb[0].mxu0
        %1589 = vmatprep.mubr.f32.mxu0 0.0
        %v1590 = vand.u32 %v269, 4294901760
        %1591 = vmatmul.mubr.f32.gmra.mrb[0].mxu0 %v1590
        %v1592 = vpop.f32.mrb[0].mxu0
        %v1593 = vadd.f32 %v1298, %v1592
        %v1594 = vpop.f32.mrb[0].mxu0
        %1595 = vmatprep.mubr.f32.mxu0 0.0
        %v1596 = vand.u32 %v270, 4294901760
        %1597 = vmatmul.mubr.f32.gmra.mrb[0].mxu0 %v1596
        %v1598 = vpop.f32.mrb[0].mxu0
        %v1599 = vadd.f32 %v1306, %v1598
        %v1600 = vpop.f32.mrb[0].mxu0
        %1601 = vmatprep.mubr.f32.mxu0 0.0
        %v1602 = vand.u32 %v271, 4294901760
        %1603 = vmatmul.mubr.f32.gmra.mrb[0].mxu0 %v1602
        %v1604 = vpop.f32.mrb[0].mxu0
        %v1605 = vadd.f32 %v1314, %v1604
        %v1606 = vpop.f32.mrb[0].mxu0
        %1607 = vmatprep.mubr.f32.mxu0 0.0
        %v1608 = vand.u32 %v272, 4294901760
        %1609 = vmatmul.mubr.f32.gmra.mrb[0].mxu0 %v1608
        %v1610 = vpop.f32.mrb[0].mxu0
        %v1611 = vadd.f32 %v1322, %v1610
        %v1612 = vpop.f32.mrb[0].mxu0
        %1613 = vmatprep.mubr.f32.mxu0 0.0
        %v1614 = vand.u32 %v273, 4294901760
        %1615 = vmatmul.mubr.f32.gmra.mrb[0].mxu0 %v1614
        %v1616 = vpop.f32.mrb[0].mxu0
        %v1617 = vadd.f32 %v1330, %v1616
        %v1618 = vpop.f32.mrb[0].mxu0
        %1619 = vmatprep.mubr.f32.mxu0 0.0
        %v1620 = vand.u32 %v274, 4294901760
        %1621 = vmatmul.mubr.f32.gmra.mrb[0].mxu0 %v1620
        %v1622 = vpop.f32.mrb[0].mxu0
        %v1623 = vadd.f32 %v1338, %v1622
        %v1624 = vpop.f32.mrb[0].mxu0
        %1625 = vmatprep.mubr.f32.mxu0 0.0
        %v1626 = vand.u32 %v275, 4294901760
        %1627 = vmatmul.mubr.f32.gmra.mrb[0].mxu0 %v1626
        %v1628 = vpop.f32.mrb[0].mxu0
        %v1629 = vadd.f32 %v1346, %v1628
        %v1630 = vpop.f32.mrb[0].mxu0
        %1631 = vmatprep.mubr.f32.mxu0 0.0
        %v1632 = vand.u32 %v276, 4294901760
        %1633 = vmatmul.mubr.f32.gmra.mrb[0].mxu0 %v1632
        %v1634 = vpop.f32.mrb[0].mxu0
        %v1635 = vadd.f32 %v1354, %v1634
        %v1636 = vpop.f32.mrb[0].mxu0
        %1637 = vmatprep.mubr.f32.mxu0 0.0
        %v1638 = vand.u32 %v277, 4294901760
        %1639 = vmatmul.mubr.f32.gmra.mrb[0].mxu0 %v1638
        %v1640 = vpop.f32.mrb[0].mxu0
        %v1641 = vadd.f32 %v1362, %v1640
        %v1642 = vpop.f32.mrb[0].mxu0
        %1643 = vmatprep.mubr.f32.mxu0 0.0
        %v1644 = vand.u32 %v278, 4294901760
        %1645 = vmatmul.mubr.f32.gmra.mrb[0].mxu0 %v1644
        %v1646 = vpop.f32.mrb[0].mxu0
        %v1647 = vadd.f32 %v1370, %v1646
        %v1648 = vpop.f32.mrb[0].mxu0
        %1649 = vmatprep.mubr.f32.mxu0 0.0
        %v1650 = vand.u32 %v279, 4294901760
        %1651 = vmatmul.mubr.f32.gmra.mrb[0].mxu0 %v1650
        %v1652 = vpop.f32.mrb[0].mxu0
        %v1653 = vadd.f32 %v1378, %v1652
        %v1654 = vpop.f32.mrb[0].mxu0
        %1655 = vmatprep.mubr.f32.mxu0 0.0
        %v1656 = vand.u32 %v280, 4294901760
        %1657 = vmatmul.mubr.f32.gmra.mrb[0].mxu0 %v1656
        %v1658 = vpop.f32.mrb[0].mxu0
        %v1659 = vadd.f32 %v1386, %v1658
        %v1660 = vpop.f32.mrb[0].mxu0
        %1661 = vmatprep.mubr.f32.mxu0 0.0
        %v1662 = vand.u32 %v281, 4294901760
        %1663 = vmatmul.mubr.f32.gmra.mrb[0].mxu0 %v1662
        %v1664 = vpop.f32.mrb[0].mxu0
        %v1665 = vadd.f32 %v1394, %v1664
        %v1666 = vpop.f32.mrb[0].mxu0
        %1667 = vmatprep.mubr.f32.mxu0 0.0
        %v1668 = vand.u32 %v282, 4294901760
        %1669 = vmatmul.mubr.f32.gmra.mrb[0].mxu0 %v1668
        %v1670 = vpop.f32.mrb[0].mxu0
        %v1671 = vadd.f32 %v1402, %v1670
        %v1672 = vpop.f32.mrb[0].mxu0
        %1673 = vmatprep.mubr.f32.mxu0 0.0
        %v1674 = vand.u32 %v283, 4294901760
        %1675 = vmatmul.mubr.f32.gmra.mrb[0].mxu0 %v1674
        %v1676 = vpop.f32.mrb[0].mxu0
        %v1677 = vadd.f32 %v1410, %v1676
        %v1678 = vpop.f32.mrb[0].mxu0
        %1679 = vmatprep.mubr.f32.mxu0 0.0
        %v1680 = vand.u32 %v284, 4294901760
        %1681 = vmatmul.mubr.f32.gmra.mrb[0].mxu0 %v1680
        %v1682 = vpop.f32.mrb[0].mxu0
        %v1683 = vadd.f32 %v1418, %v1682
        %v1684 = vpop.f32.mrb[0].mxu0
        %1685 = vmatprep.mubr.f32.mxu0 0.0
        %v1686 = vand.u32 %v285, 4294901760
        %1687 = vmatmul.mubr.f32.gmra.mrb[0].mxu0 %v1686
        %v1688 = vpop.f32.mrb[0].mxu0
        %v1689 = vadd.f32 %v1426, %v1688
        %v1690 = vpop.f32.mrb[0].mxu0
        %1691 = vmatprep.mubr.f32.mxu0 0.0
        %v1692 = vand.u32 %v286, 4294901760
        %1693 = vmatmul.mubr.f32.gmra.mrb[0].mxu0 %v1692
        %v1694 = vpop.f32.mrb[0].mxu0
        %v1695 = vadd.f32 %v1434, %v1694
        %v1696 = vpop.f32.mrb[0].mxu0
        %1697 = vmatprep.mubr.f32.mxu0 0.0
        %v1698 = vand.u32 %v287, 4294901760
        %1699 = vmatmul.mubr.f32.gmra.mrb[0].mxu0 %v1698
        %v1700 = vpop.f32.mrb[0].mxu0
        %v1701 = vadd.f32 %v1442, %v1700
        %v1702 = vpop.f32.mrb[0].mxu0
        %1703 = vmatprep.mubr.f32.mxu0 0.0
        %v1704 = vand.u32 %v288, 4294901760
        %1705 = vmatmul.mubr.f32.gmra.mrb[0].mxu0 %v1704
        %v1706 = vpop.f32.mrb[0].mxu0
        %v1707 = vadd.f32 %v1450, %v1706
        %v1708 = vpop.f32.mrb[0].mxu0
        %1709 = vdwg.mxu0
        %1710 = vmatprep.subr.mxu0 0.0
        %v1711 = vand.u32 %v289, 4294901760
        %1712 = vmatpush1.msra.mxu0 %v1711
        %1713 = vmatprep.subr.mxu0 0.0
        %v1714 = vand.u32 %v290, 4294901760
        %1715 = vmatpush1.msra.mxu0 %v1714
        %1716 = vmatprep.subr.mxu0 0.0
        %v1717 = vand.u32 %v291, 4294901760
        %1718 = vmatpush1.msra.mxu0 %v1717
        %1719 = vmatprep.subr.mxu0 0.0
        %v1720 = vand.u32 %v292, 4294901760
        %1721 = vmatpush1.msra.mxu0 %v1720
        %1722 = vmatprep.subr.mxu0 0.0
        %v1723 = vand.u32 %v293, 4294901760
        %1724 = vmatpush1.msra.mxu0 %v1723
        %1725 = vmatprep.subr.mxu0 0.0
        %v1726 = vand.u32 %v294, 4294901760
        %1727 = vmatpush1.msra.mxu0 %v1726
        %1728 = vmatprep.subr.mxu0 0.0
        %v1729 = vand.u32 %v295, 4294901760
        %1730 = vmatpush1.msra.mxu0 %v1729
        %1731 = vmatprep.subr.mxu0 0.0
        %v1732 = vand.u32 %v296, 4294901760
        %1733 = vmatpush1.msra.mxu0 %v1732
        %1734 = vmatprep.subr.mxu0 0.0
        %v1735 = vand.u32 %v297, 4294901760
        %1736 = vmatpush1.msra.mxu0 %v1735
        %1737 = vmatprep.subr.mxu0 0.0
        %v1738 = vand.u32 %v298, 4294901760
        %1739 = vmatpush1.msra.mxu0 %v1738
        %1740 = vmatprep.subr.mxu0 0.0
        %v1741 = vand.u32 %v299, 4294901760
        %1742 = vmatpush1.msra.mxu0 %v1741
        %1743 = vmatprep.subr.mxu0 0.0
        %v1744 = vand.u32 %v300, 4294901760
        %1745 = vmatpush1.msra.mxu0 %v1744
        %1746 = vmatprep.subr.mxu0 0.0
        %v1747 = vand.u32 %v301, 4294901760
        %1748 = vmatpush1.msra.mxu0 %v1747
        %1749 = vmatprep.subr.mxu0 0.0
        %v1750 = vand.u32 %v302, 4294901760
        %1751 = vmatpush1.msra.mxu0 %v1750
        %1752 = vmatprep.subr.mxu0 0.0
        %v1753 = vand.u32 %v303, 4294901760
        %1754 = vmatpush1.msra.mxu0 %v1753
        %1755 = vmatprep.subr.mxu0 0.0
        %v1756 = vand.u32 %v304, 4294901760
        %1757 = vmatpush1.msra.mxu0 %v1756
        %1758 = vmatprep.subr.mxu0 0.0
        %1759 = vmatpush1.msra.mxu0 0.0
        %1760 = vmatprep.subr.mxu0 0.0
        %1761 = vmatpush1.msra.mxu0 0.0
        %1762 = vmatprep.subr.mxu0 0.0
        %1763 = vmatpush1.msra.mxu0 0.0
        %1764 = vmatprep.subr.mxu0 0.0
        %1765 = vmatpush1.msra.mxu0 0.0
        %1766 = vmatprep.subr.mxu0 0.0
        %1767 = vmatpush1.msra.mxu0 0.0
        %1768 = vmatprep.subr.mxu0 0.0
        %1769 = vmatpush1.msra.mxu0 0.0
        %1770 = vmatprep.subr.mxu0 0.0
        %1771 = vmatpush1.msra.mxu0 0.0
        %1772 = vmatprep.subr.mxu0 0.0
        %1773 = vmatpush1.msra.mxu0 0.0
        %1774 = vmatprep.subr.mxu0 0.0
        %1775 = vmatpush1.msra.mxu0 0.0
        %1776 = vmatprep.subr.mxu0 0.0
        %1777 = vmatpush1.msra.mxu0 0.0
        %1778 = vmatprep.subr.mxu0 0.0
        %1779 = vmatpush1.msra.mxu0 0.0
        %1780 = vmatprep.subr.mxu0 0.0
        %1781 = vmatpush1.msra.mxu0 0.0
        %1782 = vmatprep.subr.mxu0 0.0
        %1783 = vmatpush1.msra.mxu0 0.0
        %1784 = vmatprep.subr.mxu0 0.0
        %1785 = vmatpush1.msra.mxu0 0.0
        %1786 = vmatprep.subr.mxu0 0.0
        %1787 = vmatpush1.msra.mxu0 0.0
        %1788 = vmatprep.subr.mxu0 0.0
        %1789 = vmatpush1.msra.mxu0 0.0
        %1790 = vmatprep.mubr.f32.mxu0 0.0
        %v1791 = vand.u32 %v265, 4294901760
        %1792 = vmatmul.mubr.f32.gmra.mrb[0].mxu0 %v1791
        %v1793 = vpop.f32.mrb[0].mxu0
        %v1794 = vadd.f32 %v1569, %v1793
        %v1795 = vpop.f32.mrb[0].mxu0
        %1796 = vmatprep.mubr.f32.mxu0 0.0
        %v1797 = vand.u32 %v266, 4294901760
        %1798 = vmatmul.mubr.f32.gmra.mrb[0].mxu0 %v1797
        %v1799 = vpop.f32.mrb[0].mxu0
        %v1800 = vadd.f32 %v1575, %v1799
        %v1801 = vpop.f32.mrb[0].mxu0
        %1802 = vmatprep.mubr.f32.mxu0 0.0
        %v1803 = vand.u32 %v267, 4294901760
        %1804 = vmatmul.mubr.f32.gmra.mrb[0].mxu0 %v1803
        %v1805 = vpop.f32.mrb[0].mxu0
        %v1806 = vadd.f32 %v1581, %v1805
        %v1807 = vpop.f32.mrb[0].mxu0
        %1808 = vmatprep.mubr.f32.mxu0 0.0
        %v1809 = vand.u32 %v268, 4294901760
        %1810 = vmatmul.mubr.f32.gmra.mrb[0].mxu0 %v1809
        %v1811 = vpop.f32.mrb[0].mxu0
        %v1812 = vadd.f32 %v1587, %v1811
        %v1813 = vpop.f32.mrb[0].mxu0
        %1814 = vmatprep.mubr.f32.mxu0 0.0
        %v1815 = vand.u32 %v269, 4294901760
        %1816 = vmatmul.mubr.f32.gmra.mrb[0].mxu0 %v1815
        %v1817 = vpop.f32.mrb[0].mxu0
        %v1818 = vadd.f32 %v1593, %v1817
        %v1819 = vpop.f32.mrb[0].mxu0
        %1820 = vmatprep.mubr.f32.mxu0 0.0
        %v1821 = vand.u32 %v270, 4294901760
        %1822 = vmatmul.mubr.f32.gmra.mrb[0].mxu0 %v1821
        %v1823 = vpop.f32.mrb[0].mxu0
        %v1824 = vadd.f32 %v1599, %v1823
        %v1825 = vpop.f32.mrb[0].mxu0
        %1826 = vmatprep.mubr.f32.mxu0 0.0
        %v1827 = vand.u32 %v271, 4294901760
        %1828 = vmatmul.mubr.f32.gmra.mrb[0].mxu0 %v1827
        %v1829 = vpop.f32.mrb[0].mxu0
        %v1830 = vadd.f32 %v1605, %v1829
        %v1831 = vpop.f32.mrb[0].mxu0
        %1832 = vmatprep.mubr.f32.mxu0 0.0
        %v1833 = vand.u32 %v272, 4294901760
        %1834 = vmatmul.mubr.f32.gmra.mrb[0].mxu0 %v1833
        %v1835 = vpop.f32.mrb[0].mxu0
        %v1836 = vadd.f32 %v1611, %v1835
        %v1837 = vpop.f32.mrb[0].mxu0
        %1838 = vmatprep.mubr.f32.mxu0 0.0
        %v1839 = vand.u32 %v273, 4294901760
        %1840 = vmatmul.mubr.f32.gmra.mrb[0].mxu0 %v1839
        %v1841 = vpop.f32.mrb[0].mxu0
        %v1842 = vadd.f32 %v1617, %v1841
        %v1843 = vpop.f32.mrb[0].mxu0
        %1844 = vmatprep.mubr.f32.mxu0 0.0
        %v1845 = vand.u32 %v274, 4294901760
        %1846 = vmatmul.mubr.f32.gmra.mrb[0].mxu0 %v1845
        %v1847 = vpop.f32.mrb[0].mxu0
        %v1848 = vadd.f32 %v1623, %v1847
        %v1849 = vpop.f32.mrb[0].mxu0
        %1850 = vmatprep.mubr.f32.mxu0 0.0
        %v1851 = vand.u32 %v275, 4294901760
        %1852 = vmatmul.mubr.f32.gmra.mrb[0].mxu0 %v1851
        %v1853 = vpop.f32.mrb[0].mxu0
        %v1854 = vadd.f32 %v1629, %v1853
        %v1855 = vpop.f32.mrb[0].mxu0
        %1856 = vmatprep.mubr.f32.mxu0 0.0
        %v1857 = vand.u32 %v276, 4294901760
        %1858 = vmatmul.mubr.f32.gmra.mrb[0].mxu0 %v1857
        %v1859 = vpop.f32.mrb[0].mxu0
        %v1860 = vadd.f32 %v1635, %v1859
        %v1861 = vpop.f32.mrb[0].mxu0
        %1862 = vmatprep.mubr.f32.mxu0 0.0
        %v1863 = vand.u32 %v277, 4294901760
        %1864 = vmatmul.mubr.f32.gmra.mrb[0].mxu0 %v1863
        %v1865 = vpop.f32.mrb[0].mxu0
        %v1866 = vadd.f32 %v1641, %v1865
        %v1867 = vpop.f32.mrb[0].mxu0
        %1868 = vmatprep.mubr.f32.mxu0 0.0
        %v1869 = vand.u32 %v278, 4294901760
        %1870 = vmatmul.mubr.f32.gmra.mrb[0].mxu0 %v1869
        %v1871 = vpop.f32.mrb[0].mxu0
        %v1872 = vadd.f32 %v1647, %v1871
        %v1873 = vpop.f32.mrb[0].mxu0
        %1874 = vmatprep.mubr.f32.mxu0 0.0
        %v1875 = vand.u32 %v279, 4294901760
        %1876 = vmatmul.mubr.f32.gmra.mrb[0].mxu0 %v1875
        %v1877 = vpop.f32.mrb[0].mxu0
        %v1878 = vadd.f32 %v1653, %v1877
        %v1879 = vpop.f32.mrb[0].mxu0
        %1880 = vmatprep.mubr.f32.mxu0 0.0
        %v1881 = vand.u32 %v280, 4294901760
        %1882 = vmatmul.mubr.f32.gmra.mrb[0].mxu0 %v1881
        %v1883 = vpop.f32.mrb[0].mxu0
        %v1884 = vadd.f32 %v1659, %v1883
        %v1885 = vpop.f32.mrb[0].mxu0
        %1886 = vmatprep.mubr.f32.mxu0 0.0
        %v1887 = vand.u32 %v281, 4294901760
        %1888 = vmatmul.mubr.f32.gmra.mrb[0].mxu0 %v1887
        %v1889 = vpop.f32.mrb[0].mxu0
        %v1890 = vadd.f32 %v1665, %v1889
        %v1891 = vpop.f32.mrb[0].mxu0
        %1892 = vmatprep.mubr.f32.mxu0 0.0
        %v1893 = vand.u32 %v282, 4294901760
        %1894 = vmatmul.mubr.f32.gmra.mrb[0].mxu0 %v1893
        %v1895 = vpop.f32.mrb[0].mxu0
        %v1896 = vadd.f32 %v1671, %v1895
        %v1897 = vpop.f32.mrb[0].mxu0
        %1898 = vmatprep.mubr.f32.mxu0 0.0
        %v1899 = vand.u32 %v283, 4294901760
        %1900 = vmatmul.mubr.f32.gmra.mrb[0].mxu0 %v1899
        %v1901 = vpop.f32.mrb[0].mxu0
        %v1902 = vadd.f32 %v1677, %v1901
        %v1903 = vpop.f32.mrb[0].mxu0
        %1904 = vmatprep.mubr.f32.mxu0 0.0
        %v1905 = vand.u32 %v284, 4294901760
        %1906 = vmatmul.mubr.f32.gmra.mrb[0].mxu0 %v1905
        %v1907 = vpop.f32.mrb[0].mxu0
        %v1908 = vadd.f32 %v1683, %v1907
        %v1909 = vpop.f32.mrb[0].mxu0
        %1910 = vmatprep.mubr.f32.mxu0 0.0
        %v1911 = vand.u32 %v285, 4294901760
        %1912 = vmatmul.mubr.f32.gmra.mrb[0].mxu0 %v1911
        %v1913 = vpop.f32.mrb[0].mxu0
        %v1914 = vadd.f32 %v1689, %v1913
        %v1915 = vpop.f32.mrb[0].mxu0
        %1916 = vmatprep.mubr.f32.mxu0 0.0
        %v1917 = vand.u32 %v286, 4294901760
        %1918 = vmatmul.mubr.f32.gmra.mrb[0].mxu0 %v1917
        %v1919 = vpop.f32.mrb[0].mxu0
        %v1920 = vadd.f32 %v1695, %v1919
        %v1921 = vpop.f32.mrb[0].mxu0
        %1922 = vmatprep.mubr.f32.mxu0 0.0
        %v1923 = vand.u32 %v287, 4294901760
        %1924 = vmatmul.mubr.f32.gmra.mrb[0].mxu0 %v1923
        %v1925 = vpop.f32.mrb[0].mxu0
        %v1926 = vadd.f32 %v1701, %v1925
        %v1927 = vpop.f32.mrb[0].mxu0
        %1928 = vmatprep.mubr.f32.mxu0 0.0
        %v1929 = vand.u32 %v288, 4294901760
        %1930 = vmatmul.mubr.f32.gmra.mrb[0].mxu0 %v1929
        %v1931 = vpop.f32.mrb[0].mxu0
        %v1932 = vadd.f32 %v1707, %v1931
        %v1933 = vpop.f32.mrb[0].mxu0
        %1934 = vdwg.mxu0
        %s1935 = smul.u32 %s26, 192
        %v1936 = vlaneseq
        %v1937 = vshrl.u32 %v1936, 7
        %v1938 = vadd.s32 %v1937, 8
        %v1939 = vadd.s32 %v1937, 16
        %v1940 = vadd.s32 %v1937, 24
        %v1941 = vadd.s32 %v1937, 32
        %v1942 = vadd.s32 %v1937, 40
        %v1943 = vadd.s32 %v1937, 48
        %v1944 = vadd.s32 %v1937, 56
        %v1945 = vadd.s32 %v1937, 64
        %v1946 = vadd.s32 %v1937, 72
        %v1947 = vadd.s32 %v1937, 80
        %v1948 = vadd.s32 %v1937, 88
        %v1949 = vadd.s32 %v1937, 96
        %v1950 = vadd.s32 %v1937, 104
        %v1951 = vadd.s32 %v1937, 112
        %v1952 = vadd.s32 %v1937, 120
        %v1953 = vadd.s32 %v1937, 128
        %v1954 = vadd.s32 %v1937, 136
        %v1955 = vadd.s32 %v1937, 144
        %v1956 = vadd.s32 %v1937, 152
        %v1957 = vadd.s32 %v1937, 160
        %v1958 = vadd.s32 %v1937, 168
        %v1959 = vadd.s32 %v1937, 176
        %v1960 = vadd.s32 %v1937, 184
        %v1961 = vstv %s1935
        %v1962 = vadd.s32 %v1961, %v1937
        %v1963 = vadd.s32 %v1961, %v1938
        %v1964 = vadd.s32 %v1961, %v1939
        %v1965 = vadd.s32 %v1961, %v1940
        %v1966 = vadd.s32 %v1961, %v1941
        %v1967 = vadd.s32 %v1961, %v1942
        %v1968 = vadd.s32 %v1961, %v1943
        %v1969 = vadd.s32 %v1961, %v1944
        %v1970 = vadd.s32 %v1961, %v1945
        %v1971 = vadd.s32 %v1961, %v1946
        %v1972 = vadd.s32 %v1961, %v1947
        %v1973 = vadd.s32 %v1961, %v1948
        %v1974 = vadd.s32 %v1961, %v1949
        %v1975 = vadd.s32 %v1961, %v1950
        %v1976 = vadd.s32 %v1961, %v1951
        %v1977 = vadd.s32 %v1961, %v1952
        %v1978 = vadd.s32 %v1961, %v1953
        %v1979 = vadd.s32 %v1961, %v1954
        %v1980 = vadd.s32 %v1961, %v1955
        %v1981 = vadd.s32 %v1961, %v1956
        %v1982 = vadd.s32 %v1961, %v1957
        %v1983 = vadd.s32 %v1961, %v1958
        %v1984 = vadd.s32 %v1961, %v1959
        %v1985 = vadd.s32 %v1961, %v1960
        %vm1986 = vcmp.lt.s32.totalorder %v1962, 512
        %vm1987 = vcmp.lt.s32.totalorder %v1963, 512
        %vm1988 = vcmp.lt.s32.totalorder %v1964, 512
        %vm1989 = vcmp.lt.s32.totalorder %v1965, 512
        %vm1990 = vcmp.lt.s32.totalorder %v1966, 512
        %vm1991 = vcmp.lt.s32.totalorder %v1967, 512
        %vm1992 = vcmp.lt.s32.totalorder %v1968, 512
        %vm1993 = vcmp.lt.s32.totalorder %v1969, 512
        %vm1994 = vcmp.lt.s32.totalorder %v1970, 512
        %vm1995 = vcmp.lt.s32.totalorder %v1971, 512
        %vm1996 = vcmp.lt.s32.totalorder %v1972, 512
        %vm1997 = vcmp.lt.s32.totalorder %v1973, 512
        %vm1998 = vcmp.lt.s32.totalorder %v1974, 512
        %vm1999 = vcmp.lt.s32.totalorder %v1975, 512
        %vm2000 = vcmp.lt.s32.totalorder %v1976, 512
        %vm2001 = vcmp.lt.s32.totalorder %v1977, 512
        %vm2002 = vcmp.lt.s32.totalorder %v1978, 512
        %vm2003 = vcmp.lt.s32.totalorder %v1979, 512
        %vm2004 = vcmp.lt.s32.totalorder %v1980, 512
        %vm2005 = vcmp.lt.s32.totalorder %v1981, 512
        %vm2006 = vcmp.lt.s32.totalorder %v1982, 512
        %vm2007 = vcmp.lt.s32.totalorder %v1983, 512
        %vm2008 = vcmp.lt.s32.totalorder %v1984, 512
        %vm2009 = vcmp.lt.s32.totalorder %v1985, 512
        %v2010 = vsel %vm1986, 1, 0
        %v2011 = vsel %vm1987, 1, 0
        %v2012 = vsel %vm1988, 1, 0
        %v2013 = vsel %vm1989, 1, 0
        %v2014 = vsel %vm1990, 1, 0
        %v2015 = vsel %vm1991, 1, 0
        %v2016 = vsel %vm1992, 1, 0
        %v2017 = vsel %vm1993, 1, 0
        %v2018 = vsel %vm1994, 1, 0
        %v2019 = vsel %vm1995, 1, 0
        %v2020 = vsel %vm1996, 1, 0
        %v2021 = vsel %vm1997, 1, 0
        %v2022 = vsel %vm1998, 1, 0
        %v2023 = vsel %vm1999, 1, 0
        %v2024 = vsel %vm2000, 1, 0
        %v2025 = vsel %vm2001, 1, 0
        %v2026 = vsel %vm2002, 1, 0
        %v2027 = vsel %vm2003, 1, 0
        %v2028 = vsel %vm2004, 1, 0
        %v2029 = vsel %vm2005, 1, 0
        %v2030 = vsel %vm2006, 1, 0
        %v2031 = vsel %vm2007, 1, 0
        %v2032 = vsel %vm2008, 1, 0
        %v2033 = vsel %vm2009, 1, 0
        %vm2034 = vcmp.eq.s32.totalorder %v2010, 1
        %vm2035 = vcmp.eq.s32.totalorder %v2011, 1
        %vm2036 = vcmp.eq.s32.totalorder %v2012, 1
        %vm2037 = vcmp.eq.s32.totalorder %v2013, 1
        %vm2038 = vcmp.eq.s32.totalorder %v2014, 1
        %vm2039 = vcmp.eq.s32.totalorder %v2015, 1
        %vm2040 = vcmp.eq.s32.totalorder %v2016, 1
        %vm2041 = vcmp.eq.s32.totalorder %v2017, 1
        %vm2042 = vcmp.eq.s32.totalorder %v2018, 1
        %vm2043 = vcmp.eq.s32.totalorder %v2019, 1
        %vm2044 = vcmp.eq.s32.totalorder %v2020, 1
        %vm2045 = vcmp.eq.s32.totalorder %v2021, 1
        %vm2046 = vcmp.eq.s32.totalorder %v2022, 1
        %vm2047 = vcmp.eq.s32.totalorder %v2023, 1
        %vm2048 = vcmp.eq.s32.totalorder %v2024, 1
        %vm2049 = vcmp.eq.s32.totalorder %v2025, 1
        %vm2050 = vcmp.eq.s32.totalorder %v2026, 1
        %vm2051 = vcmp.eq.s32.totalorder %v2027, 1
        %vm2052 = vcmp.eq.s32.totalorder %v2028, 1
        %vm2053 = vcmp.eq.s32.totalorder %v2029, 1
        %vm2054 = vcmp.eq.s32.totalorder %v2030, 1
        %vm2055 = vcmp.eq.s32.totalorder %v2031, 1
        %vm2056 = vcmp.eq.s32.totalorder %v2032, 1
        %vm2057 = vcmp.eq.s32.totalorder %v2033, 1
        %v2058 = vsel %vm2034, %v1794, 0.0
        %v2059 = vsel %vm2035, %v1800, 0.0
        %v2060 = vsel %vm2036, %v1806, 0.0
        %v2061 = vsel %vm2037, %v1812, 0.0
        %v2062 = vsel %vm2038, %v1818, 0.0
        %v2063 = vsel %vm2039, %v1824, 0.0
        %v2064 = vsel %vm2040, %v1830, 0.0
        %v2065 = vsel %vm2041, %v1836, 0.0
        %v2066 = vsel %vm2042, %v1842, 0.0
        %v2067 = vsel %vm2043, %v1848, 0.0
        %v2068 = vsel %vm2044, %v1854, 0.0
        %v2069 = vsel %vm2045, %v1860, 0.0
        %v2070 = vsel %vm2046, %v1866, 0.0
        %v2071 = vsel %vm2047, %v1872, 0.0
        %v2072 = vsel %vm2048, %v1878, 0.0
        %v2073 = vsel %vm2049, %v1884, 0.0
        %v2074 = vsel %vm2050, %v1890, 0.0
        %v2075 = vsel %vm2051, %v1896, 0.0
        %v2076 = vsel %vm2052, %v1902, 0.0
        %v2077 = vsel %vm2053, %v1908, 0.0
        %v2078 = vsel %vm2054, %v1914, 0.0
        %v2079 = vsel %vm2055, %v1920, 0.0
        %v2080 = vsel %vm2056, %v1926, 0.0
        %v2081 = vsel %vm2057, %v1932, 0.0
        %2082 = vst [vmem:[%s240] sm:$0xff] %v2058
        %2083 = vst [vmem:[%s240 + $0x8] sm:$0xff] %v2059
        %2084 = vst [vmem:[%s240 + $0x10] sm:$0xff] %v2060
        %2085 = vst [vmem:[%s240 + $0x18] sm:$0xff] %v2061
        %2086 = vst [vmem:[%s240 + $0x20] sm:$0xff] %v2062
        %2087 = vst [vmem:[%s240 + $0x28] sm:$0xff] %v2063
        %2088 = vst [vmem:[%s240 + $0x30] sm:$0xff] %v2064
        %2089 = vst [vmem:[%s240 + $0x38] sm:$0xff] %v2065
        %2090 = vst [vmem:[%s240 + $0x40] sm:$0xff] %v2066
        %2091 = vst [vmem:[%s240 + $0x48] sm:$0xff] %v2067
        %2092 = vst [vmem:[%s240 + $0x50] sm:$0xff] %v2068
        %2093 = vst [vmem:[%s240 + $0x58] sm:$0xff] %v2069
        %2094 = vst [vmem:[%s240 + $0x60] sm:$0xff] %v2070
        %2095 = vst [vmem:[%s240 + $0x68] sm:$0xff] %v2071
        %2096 = vst [vmem:[%s240 + $0x70] sm:$0xff] %v2072
        %2097 = vst [vmem:[%s240 + $0x78] sm:$0xff] %v2073
        %2098 = vst [vmem:[%s240 + $0x80] sm:$0xff] %v2074
        %2099 = vst [vmem:[%s240 + $0x88] sm:$0xff] %v2075
        %2100 = vst [vmem:[%s240 + $0x90] sm:$0xff] %v2076
        %2101 = vst [vmem:[%s240 + $0x98] sm:$0xff] %v2077
        %2102 = vst [vmem:[%s240 + $0xa0] sm:$0xff] %v2078
        %2103 = vst [vmem:[%s240 + $0xa8] sm:$0xff] %v2079
        %2104 = vst [vmem:[%s240 + $0xb0] sm:$0xff] %v2080
        %2105 = vst [vmem:[%s240 + $0xb8] sm:$0xff] %v2081
        %v2106 = vadd.f32 %v2058, %v2059
        %v2107 = vadd.f32 %v2106, %v2060
        %v2108 = vadd.f32 %v2107, %v2061
        %v2109 = vadd.f32 %v2108, %v2062
        %v2110 = vadd.f32 %v2109, %v2063
        %v2111 = vadd.f32 %v2110, %v2064
        %v2112 = vadd.f32 %v2111, %v2065
        %v2113 = vadd.f32 %v2112, %v2066
        %v2114 = vadd.f32 %v2113, %v2067
        %v2115 = vadd.f32 %v2114, %v2068
        %v2116 = vadd.f32 %v2115, %v2069
        %v2117 = vadd.f32 %v2116, %v2070
        %v2118 = vadd.f32 %v2117, %v2071
        %v2119 = vadd.f32 %v2118, %v2072
        %v2120 = vadd.f32 %v2119, %v2073
        %v2121 = vadd.f32 %v2120, %v2074
        %v2122 = vadd.f32 %v2121, %v2075
        %v2123 = vadd.f32 %v2122, %v2076
        %v2124 = vadd.f32 %v2123, %v2077
        %v2125 = vadd.f32 %v2124, %v2078
        %v2126 = vadd.f32 %v2125, %v2079
        %v2127 = vadd.f32 %v2126, %v2080
        %v2128 = vadd.f32 %v2127, %v2081
        %v2129 = vrot.slane %v2128, 4
        %v2130 = vadd.f32 %v2128, %v2129
        %v2131 = vrot.slane %v2130, 2
        %v2132 = vadd.f32 %v2130, %v2131
        %v2133 = vrot.slane %v2132, 1
        %v2134 = vadd.f32 %v2132, %v2133
        %v2135 = vmul.f32 %v2058, %v2058
        %v2136 = vmul.f32 %v2059, %v2059
        %v2137 = vmul.f32 %v2060, %v2060
        %v2138 = vmul.f32 %v2061, %v2061
        %v2139 = vmul.f32 %v2062, %v2062
        %v2140 = vmul.f32 %v2063, %v2063
        %v2141 = vmul.f32 %v2064, %v2064
        %v2142 = vmul.f32 %v2065, %v2065
        %v2143 = vmul.f32 %v2066, %v2066
        %v2144 = vmul.f32 %v2067, %v2067
        %v2145 = vmul.f32 %v2068, %v2068
        %v2146 = vmul.f32 %v2069, %v2069
        %v2147 = vmul.f32 %v2070, %v2070
        %v2148 = vmul.f32 %v2071, %v2071
        %v2149 = vmul.f32 %v2072, %v2072
        %v2150 = vmul.f32 %v2073, %v2073
        %v2151 = vmul.f32 %v2074, %v2074
        %v2152 = vmul.f32 %v2075, %v2075
        %v2153 = vmul.f32 %v2076, %v2076
        %v2154 = vmul.f32 %v2077, %v2077
        %v2155 = vmul.f32 %v2078, %v2078
        %v2156 = vmul.f32 %v2079, %v2079
        %v2157 = vmul.f32 %v2080, %v2080
        %v2158 = vmul.f32 %v2081, %v2081
        %v2159 = vadd.f32 %v2135, %v2136
        %v2160 = vadd.f32 %v2159, %v2137
        %v2161 = vadd.f32 %v2160, %v2138
        %v2162 = vadd.f32 %v2161, %v2139
        %v2163 = vadd.f32 %v2162, %v2140
        %v2164 = vadd.f32 %v2163, %v2141
        %v2165 = vadd.f32 %v2164, %v2142
        %v2166 = vadd.f32 %v2165, %v2143
        %v2167 = vadd.f32 %v2166, %v2144
        %v2168 = vadd.f32 %v2167, %v2145
        %v2169 = vadd.f32 %v2168, %v2146
        %v2170 = vadd.f32 %v2169, %v2147
        %v2171 = vadd.f32 %v2170, %v2148
        %v2172 = vadd.f32 %v2171, %v2149
        %v2173 = vadd.f32 %v2172, %v2150
        %v2174 = vadd.f32 %v2173, %v2151
        %v2175 = vadd.f32 %v2174, %v2152
        %v2176 = vadd.f32 %v2175, %v2153
        %v2177 = vadd.f32 %v2176, %v2154
        %v2178 = vadd.f32 %v2177, %v2155
        %v2179 = vadd.f32 %v2178, %v2156
        %v2180 = vadd.f32 %v2179, %v2157
        %v2181 = vadd.f32 %v2180, %v2158
        %v2182 = vrot.slane %v2181, 4
        %v2183 = vadd.f32 %v2181, %v2182
        %v2184 = vrot.slane %v2183, 2
        %v2185 = vadd.f32 %v2183, %v2184
        %v2186 = vrot.slane %v2185, 1
        %v2187 = vadd.f32 %v2185, %v2186
        %2188 = vst [vmem:[%s247] sm:$0xff] %v2134
        %2189 = vst [vmem:[%s254] sm:$0xff] %v2187
        %s2190 = sand.u32 %s81, 1
        %s2191 = scalar_lea.sflag [#allocation4], %s2190
        %s2192 = sand.u32 %s81, 1
        %s2193 = smul.addr %s2192, 192
        %s2194 = scalar_lea.vmem [#allocation7], %s2193
        %s2195 = sand.u32 %s26, 1
        %s2196 = scalar_lea.sflag [#allocation9], %s2195
        %s2197 = sand.u32 %s107, 1
        %s2198 = smul.addr %s2197, 8
        %s2199 = scalar_lea.vmem [#allocation8], %s2198
        %s2200 = sand.u32 %s26, 1
        %s2201 = scalar_lea.sflag [#allocation9], %s2200
        %s2202 = sand.u32 %s133, 1
        %s2203 = smul.addr %s2202, 8
        %s2204 = scalar_lea.vmem [#allocation10], %s2203
        // Predicated region
        $region37: #{tpu_custom_call.1} parent=27 // pred_check
          %p2205 = pneg %p91
        $region38: #{tpu_custom_call.1} parent=27 // pred_check_branch
          %2207 = sbr.rel (%p2205) target = $region40
        $region39: #{tpu_custom_call.1} parent=27 // pred_region
          %s2208 = smul.u32 24, %s26
          %s2209 = ssub.s32 64, %s2208
          %p2210 = scmp.lt.s32.totalorder %s2209, 24
          %s2211 = scalar_select %p2210, %s2209, 24
          %s2212 = smul.u32 128, %s2211
          %s2214 = ssub.s32 3072, %s2212
          %2215 = vsyncadd %s2191, %s2214
          %p2216 = scmp.ne.s32.totalorder 0, %s2212
          %s2217 = smul.addr %s2208, 128
          %s2218 = scalar_lea.hbm %s2, %s2217
          %s2219 = smul.u32 8, %s2211
          %s2220 = sshll.u32 %s2194, 4
          %s2221 = int_to_ptr.vmem [resolvable:$true] %s2220
          %s2222 = sshll.u32 %s2219, 4
          %2226 = dma.vmem_to_hbm [thread:$0]  (%p2216), %s2221, %s2222, %s2218, %s2191, 128, 128, 8
        $region40: #{tpu_custom_call.1} parent=27 // pred_fallthru
          _
        // Predicated region
        $region41: #{tpu_custom_call.1} parent=27 // pred_check
          %p2227 = pneg %p117
        $region42: #{tpu_custom_call.1} parent=27 // pred_check_branch
          %2229 = sbr.rel (%p2227) target = $region44
        $region43: #{tpu_custom_call.1} parent=27 // pred_region
          %s2231 = ssub.s32 128, 128
          %2232 = vsyncadd %s2196, %s2231
          %s2233 = smul.addr %s26, 128
          %s2234 = scalar_lea.hbm %s3, %s2233
          %s2236 = sshll.u32 %s2199, 4
          %s2237 = int_to_ptr.vmem [resolvable:$true] %s2236
          %2239 = dma.vmem_to_hbm [thread:$0]  %s2237, 128, %s2234, %s2196
        $region44: #{tpu_custom_call.1} parent=27 // pred_fallthru
          _
        // Predicated region
        $region45: #{tpu_custom_call.1} parent=27 // pred_check
          %p2240 = pneg %p143
        $region46: #{tpu_custom_call.1} parent=27 // pred_check_branch
          %2242 = sbr.rel (%p2240) target = $region48
        $region47: #{tpu_custom_call.1} parent=27 // pred_region
          %s2244 = ssub.s32 128, 128
          %2245 = vsyncadd %s2201, %s2244
          %s2246 = smul.addr %s26, 128
          %s2247 = scalar_lea.hbm %s4, %s2246
          %s2249 = sshll.u32 %s2204, 4
          %s2250 = int_to_ptr.vmem [resolvable:$true] %s2249
          %2252 = dma.vmem_to_hbm [thread:$0]  %s2250, 128, %s2247, %s2201
        $region48: #{tpu_custom_call.1} parent=27 // pred_fallthru
          _
      $region28: #{tpu_custom_call.1} parent=5 // pred_fallthru
        _
      %p2253 = scmp.le.s32.totalorder 2, %s21
      // Predicated region
      $region49: #{tpu_custom_call.1} parent=5 // pred_check
        %p2254 = pneg %p2253
      $region50: #{tpu_custom_call.1} parent=5 // pred_check_branch
        %2256 = sbr.rel (%p2254) target = $region52
      $region51: #{tpu_custom_call.1} parent=5 // pred_region
        %s2257 = ssub.s32 %s21, 2
        // Predicated region
        $region53: #{tpu_custom_call.1} parent=51 // pred_check
          %p2258 = pneg %p97
        $region54: #{tpu_custom_call.1} parent=51 // pred_check_branch
          %2260 = sbr.rel (%p2258) target = $region56
        $region55: #{tpu_custom_call.1} parent=51 // pred_region
          %s2261 = sand.u32 %s82, 1
          %s2262 = scalar_lea.sflag [#allocation4], %s2261
          %s2263 = sand.u32 %s82, 1
          %s2264 = smul.addr %s2263, 192
          %s2265 = scalar_lea.vmem [#allocation7], %s2264
          %2266 = dma.done %s2262, 3072
        $region56: #{tpu_custom_call.1} parent=51 // pred_fallthru
          _
        // Predicated region
        $region57: #{tpu_custom_call.1} parent=51 // pred_check
          %p2267 = pneg %p123
        $region58: #{tpu_custom_call.1} parent=51 // pred_check_branch
          %2269 = sbr.rel (%p2267) target = $region60
        $region59: #{tpu_custom_call.1} parent=51 // pred_region
          %s2270 = sand.u32 %s27, 1
          %s2271 = scalar_lea.sflag [#allocation9], %s2270
          %s2272 = sand.u32 %s108, 1
          %s2273 = smul.addr %s2272, 8
          %s2274 = scalar_lea.vmem [#allocation8], %s2273
          %2275 = dma.done %s2271, 128
        $region60: #{tpu_custom_call.1} parent=51 // pred_fallthru
          _
        // Predicated region
        $region61: #{tpu_custom_call.1} parent=51 // pred_check
          %p2276 = pneg %p149
        $region62: #{tpu_custom_call.1} parent=51 // pred_check_branch
          %2278 = sbr.rel (%p2276) target = $region64
        $region63: #{tpu_custom_call.1} parent=51 // pred_region
          %s2279 = sand.u32 %s27, 1
          %s2280 = scalar_lea.sflag [#allocation9], %s2279
          %s2281 = sand.u32 %s134, 1
          %s2282 = smul.addr %s2281, 8
          %s2283 = scalar_lea.vmem [#allocation10], %s2282
          %2284 = dma.done %s2280, 128
        $region64: #{tpu_custom_call.1} parent=51 // pred_fallthru
          _
      $region52: #{tpu_custom_call.1} parent=5 // pred_fallthru
        _
    $region6: #{tpu_custom_call.1} parent=1 // loop_footer
      %s25 = sadd.s32 1, %s21
    $region7: #{tpu_custom_call.1} parent=1 // loop_footer_branch
      %20 = sbr.rel target = $region3
    $region8: #{tpu_custom_call.1} parent=1 // loop_exit
      _
    %2285 = vsyncpa [#allocation3], 1
    %s2286 = scalar_lea.sflag [#allocation3], 1
    %2287 = vsyncpa %s2286, 1
    %2288 = vsyncpa [#allocation6], 1
    %2289 = vsyncpa [#allocation4], 1
    %s2290 = scalar_lea.sflag [#allocation4], 1
    %2291 = vsyncpa %s2290, 1
    %2292 = vsyncpa [#allocation9], 1
    %s2293 = scalar_lea.sflag [#allocation9], 1
    %2294 = vsyncpa %s2293, 1

</llo_original>
